<compile_context>
chip_gen: v5e
topology: v5e:2x2
jax: 0.10.0
libtpu: 0.0.40
codegen_flags: <defaults>
</compile_context>

<pallas_src>
import functools

import jax
import jax.numpy as jnp
from jax.experimental import pallas as pl
from jax.experimental.pallas import tpu as pltpu

LN_EPS = 1e-12


# ----------------------------- in-kernel helpers -----------------------------
def _layer_norm(x, gamma, beta, eps=LN_EPS):
    mu = jnp.mean(x, axis=-1, keepdims=True)
    var = jnp.mean(jnp.square(x - mu), axis=-1, keepdims=True)
    return (x - mu) * jax.lax.rsqrt(var + eps) * gamma + beta


# --------------------------------- kernels -----------------------------------
def _encoder_stack_kernel(x_ref, mask_ref, embg_ref, embb_ref,
                          wqkv_ref, bqkv_ref, wo_ref, bo_ref,
                          g1_ref, be1_ref, w1_ref, b1_ref,
                          w2_ref, b2_ref, g2_ref, be2_ref,
                          o_ref, h_sc, *, num_heads):
    # grid = (NB, L); residual stream kept in VMEM scratch across L ("arbitrary")
    l = pl.program_id(1)
    Bc, S, H = x_ref.shape
    nh = num_heads
    hd = H // nh
    M = Bc * S

    @pl.when(l == 0)
    def _():
        # fused embedding LayerNorm (was a separate pallas_call before)
        h_sc[...] = _layer_norm(x_ref[...], embg_ref[...], embb_ref[...])

    x = h_sc[...].reshape(M, H)                       # f32 residual stream
    xb = x.astype(jnp.bfloat16)

    # ---- fused QKV: one lane-dense (M,H)@(H,3H) MXU matmul -------------------
    # (1/sqrt(hd) scale is already folded into the Q columns of wqkv)
    qkv = (jnp.dot(xb, wqkv_ref[...], preferred_element_type=jnp.float32)
           + bqkv_ref[...]).astype(jnp.bfloat16)      # (M, 3H) bf16

    def split_heads(flat):
        # (M, H) -> (nh*Bc, S, hd): lane slices + leading stack, no transposes.
        parts = [flat[:, h * hd:(h + 1) * hd] for h in range(nh)]
        return jnp.stack(parts, axis=0).reshape(nh * Bc, S, hd)

    q = split_heads(qkv[:, 0 * H:1 * H])
    k = split_heads(qkv[:, 1 * H:2 * H])
    v = split_heads(qkv[:, 2 * H:3 * H])

    # ---- attention scores + softmax (f32 statistics, EUP reciprocal) ---------
    scores = jnp.einsum('bqd,bkd->bqk', q, k,
                        preferred_element_type=jnp.float32)      # (nh*Bc,S,S)
    scores = (scores.reshape(nh, Bc, S, S)
              + mask_ref[...][None]).reshape(nh * Bc, S, S)       # additive mask
    m = jnp.max(scores, axis=-1, keepdims=True)
    e = jnp.exp(scores - m)
    p = e * pl.reciprocal(jnp.sum(e, axis=-1, keepdims=True), approx=True)

    ctx = jnp.einsum('bqk,bkd->bqd', p.astype(jnp.bfloat16), v,
                     preferred_element_type=jnp.float32)          # (nh*Bc,S,hd)

    # merge heads (lane concat, head-major == concat order) -> one dense (M,H)@(H,H)
    ctx4 = ctx.reshape(nh, Bc, S, hd)
    ctx_flat = jnp.concatenate([ctx4[h] for h in range(nh)],
                               axis=-1).reshape(M, H).astype(jnp.bfloat16)
    attn_out = jnp.dot(ctx_flat, wo_ref[...],
                       preferred_element_type=jnp.float32) + bo_ref[...]

    h1 = _layer_norm(x + attn_out, g1_ref[...], be1_ref[...])

    ff = jnp.dot(h1.astype(jnp.bfloat16), w1_ref[...],
                 preferred_element_type=jnp.float32) + b1_ref[...]
    ff = jax.nn.gelu(ff, approximate=True)  # TODO(synk): BERT uses erf GELU
    ff = jnp.dot(ff.astype(jnp.bfloat16), w2_ref[...],
                 preferred_element_type=jnp.float32) + b2_ref[...]

    h_new = _layer_norm(h1 + ff, g2_ref[...], be2_ref[...])
    h_sc[...] = h_new.reshape(Bc, S, H)

    @pl.when(l == pl.num_programs(1) - 1)
    def _():
        o_ref[...] = h_new.reshape(Bc, S, H).astype(o_ref.dtype)   # bf16 out


def _cls_logz_kernel(h_ref, w_ref, b_ref, z_ref, m_sc, l_sc):
    # grid = (B, nV); online logsumexp over vocab tiles -> z = m + log(l)
    v = pl.program_id(1)

    @pl.when(v == 0)
    def _():
        m_sc[...] = jnp.full_like(m_sc, -jnp.inf)
        l_sc[...] = jnp.zeros_like(l_sc)

    logits = jnp.dot(h_ref[...], w_ref[...],
                     preferred_element_type=jnp.float32) + b_ref[...]
    m_new = jnp.maximum(m_sc[...], jnp.max(logits, axis=-1, keepdims=True))
    l_sc[...] = (l_sc[...] * jnp.exp(m_sc[...] - m_new)
                 + jnp.sum(jnp.exp(logits - m_new), axis=-1, keepdims=True))
    m_sc[...] = m_new

    @pl.when(v == pl.num_programs(1) - 1)
    def _():
        z_ref[...] = m_sc[...] + jnp.log(l_sc[...])


def _cls_probs_kernel(h_ref, w_ref, b_ref, z_ref, p_ref):
    # grid = (B, nV); probs tile = exp(logits - logZ) -- no full logits in HBM
    logits = jnp.dot(h_ref[...], w_ref[...],
                     preferred_element_type=jnp.float32) + b_ref[...]
    p_ref[...] = jnp.exp(logits - z_ref[...])


def _cls_loss_kernel(h_ref, y_ref, w_ref, b_ref, nll_ref, m_sc, l_sc, t_sc):
    # grid = (B, nV); fused cross-entropy: online logsumexp + label gather
    v = pl.program_id(1)
    tv = w_ref.shape[1]

    @pl.when(v == 0)
    def _():
        m_sc[...] = jnp.full_like(m_sc, -jnp.inf)
        l_sc[...] = jnp.zeros_like(l_sc)
        t_sc[...] = jnp.zeros_like(t_sc)

    logits = jnp.dot(h_ref[...], w_ref[...],
                     preferred_element_type=jnp.float32) + b_ref[...]
    m_new = jnp.maximum(m_sc[...], jnp.max(logits, axis=-1, keepdims=True))
    l_sc[...] = (l_sc[...] * jnp.exp(m_sc[...] - m_new)
                 + jnp.sum(jnp.exp(logits - m_new), axis=-1, keepdims=True))
    m_sc[...] = m_new

    col = jax.lax.broadcasted_iota(jnp.int32, logits.shape, 1) + v * tv
    hit = col == y_ref[...]                              # (S,TV) vs (S,1)
    t_sc[...] += jnp.sum(jnp.where(hit, logits, 0.0), axis=-1, keepdims=True)

    @pl.when(v == pl.num_programs(1) - 1)
    def _():
        nll_ref[...] = (m_sc[...] + jnp.log(l_sc[...])) - t_sc[...]


# ------------------------------ pallas wrappers -------------------------------
_VMEM_CAP = 48 * 1024 * 1024   # stay below v7x's 64 MiB physical VMEM per TC


def _clamp_vmem(need_bytes):
    return int(min(_VMEM_CAP, max(16 << 20, need_bytes)))


def encoder_stack(emb, mask_add, p, num_heads, emb_ln_g, emb_ln_b, num_b_chunks):
    B, S, H = emb.shape
    L = p["wqkv"].shape[0]
    F = p["w1"].shape[2]
    assert B % num_b_chunks == 0
    Bc = B // num_b_chunks

    act_in = pl.BlockSpec((Bc, S, H), lambda nb, l: (nb, 0, 0))
    act_out = pl.BlockSpec((Bc, S, H), lambda nb, l: (nb, 0, 0))
    msk = pl.BlockSpec((Bc, S, S), lambda nb, l: (nb, 0, 0))

    def const2(d):
        return pl.BlockSpec((1, d), lambda nb, l: (0, 0))

    def per_layer(*tail):
        n = len(tail)
        return pl.BlockSpec((None,) + tail, lambda nb, l, _n=n: (l,) + (0,) * _n)

    in_specs = [
        act_in, msk, const2(H), const2(H),
        per_layer(H, 3 * H), per_layer(1, 3 * H),   # wqkv, bqkv
        per_layer(H, H), per_layer(1, H),           # wo, bo
        per_layer(1, H), per_layer(1, H),           # ln1 gamma/beta
        per_layer(H, F), per_layer(1, F),           # ffn w1, b1
        per_layer(F, H), per_layer(1, H),           # ffn w2, b2
        per_layer(1, H), per_layer(1, H),           # ln2 gamma/beta
    ]

    # VMEM budget: double-buffered streamed blocks + resident scratch + margin.
    w_bytes = (H * 3 * H + H * H + H * F + F * H) * 2          # bf16 weights/layer
    b_bytes = (3 * H + H + F + H + 4 * H) * 4 + 2 * H * 4      # f32 biases + LN
    act_bytes = Bc * S * H * 4 + Bc * S * H * 2 + Bc * S * S * 4
    vlimit = _clamp_vmem(2 * (w_bytes + b_bytes + act_bytes)
                         + Bc * S * H * 4 + (4 << 20))

    kernel = functools.partial(_encoder_stack_kernel, num_heads=num_heads)
    return pl.pallas_call(
        kernel,
        out_shape=jax.ShapeDtypeStruct((B, S, H), jnp.bfloat16),
        grid=(num_b_chunks, L),
        in_specs=in_specs,
        out_specs=act_out,
        scratch_shapes=[pltpu.VMEM((Bc, S, H), jnp.float32)],
        compiler_params=pltpu.CompilerParams(
            dimension_semantics=("parallel", "arbitrary"),
            vmem_limit_bytes=vlimit),
    )(emb, mask_add, emb_ln_g, emb_ln_b,
      p["wqkv"], p["bqkv"], p["wo"], p["bo"], p["ln1_g"], p["ln1_b"],
      p["w1"], p["b1"], p["w2"], p["b2"], p["ln2_g"], p["ln2_b"])


def _cls_vmem(S, H, tile_v):
    blk = (S * H * 2 + H * tile_v * 2 + tile_v * 4
           + S * tile_v * 4 + 4 * S * 4)
    return _clamp_vmem(2 * blk + (4 << 20))


def cls_logz(h, w, b, tile_v):
    B, S, H = h.shape
    V = w.shape[1]
    return pl.pallas_call(
        _cls_logz_kernel,
        out_shape=jax.ShapeDtypeStruct((B, S, 1), jnp.float32),
        grid=(B, V // tile_v),
        in_specs=[pl.BlockSpec((None, S, H), lambda b, v: (b, 0, 0)),
                  pl.BlockSpec((H, tile_v), lambda b, v: (0, v)),
                  pl.BlockSpec((1, tile_v), lambda b, v: (0, v))],
        out_specs=pl.BlockSpec((None, S, 1), lambda b, v: (b, 0, 0)),
        scratch_shapes=[pltpu.VMEM((S, 1), jnp.float32),
                        pltpu.VMEM((S, 1), jnp.float32)],
        compiler_params=pltpu.CompilerParams(
            dimension_semantics=("parallel", "arbitrary"),
            vmem_limit_bytes=_cls_vmem(S, H, tile_v)),
    )(h, w, b)


def cls_probs(h, w, b, z, tile_v):
    B, S, H = h.shape
    V = w.shape[1]
    return pl.pallas_call(
        _cls_probs_kernel,
        out_shape=jax.ShapeDtypeStruct((B, S, V), jnp.float32),
        grid=(B, V // tile_v),
        in_specs=[pl.BlockSpec((None, S, H), lambda b, v: (b, 0, 0)),
                  pl.BlockSpec((H, tile_v), lambda b, v: (0, v)),
                  pl.BlockSpec((1, tile_v), lambda b, v: (0, v)),
                  pl.BlockSpec((None, S, 1), lambda b, v: (b, 0, 0))],
        out_specs=pl.BlockSpec((None, S, tile_v), lambda b, v: (b, 0, v)),
        compiler_params=pltpu.CompilerParams(
            dimension_semantics=("parallel", "parallel"),
            vmem_limit_bytes=_cls_vmem(S, H, tile_v)),
    )(h, w, b, z)


def cls_loss(h, y3, w, b, tile_v):
    B, S, H = h.shape
    V = w.shape[1]
    return pl.pallas_call(
        _cls_loss_kernel,
        out_shape=jax.ShapeDtypeStruct((B, S, 1), jnp.float32),
        grid=(B, V // tile_v),
        in_specs=[pl.BlockSpec((None, S, H), lambda b, v: (b, 0, 0)),
                  pl.BlockSpec((None, S, 1), lambda b, v: (b, 0, 0)),
                  pl.BlockSpec((H, tile_v), lambda b, v: (0, v)),
                  pl.BlockSpec((1, tile_v), lambda b, v: (0, v))],
        out_specs=pl.BlockSpec((None, S, 1), lambda b, v: (b, 0, 0)),
        scratch_shapes=[pltpu.VMEM((S, 1), jnp.float32),
                        pltpu.VMEM((S, 1), jnp.float32),
                        pltpu.VMEM((S, 1), jnp.float32)],
        compiler_params=pltpu.CompilerParams(
            dimension_semantics=("parallel", "arbitrary"),
            vmem_limit_bytes=_cls_vmem(S, H, tile_v)),
    )(h, y3, w, b)


# --------------------------------- model --------------------------------------
class LanguageModelPallas:
    def __init__(self, config, key):
        self.cfg = config
        H = config["hidden_size"]
        V = config["vocab_size"]
        F = config["intermediate_size"]
        P = config["max_position_embeddings"]
        L = config["num_hidden_layers"]
        nh = config["num_attention_heads"]
        assert H % nh == 0
        hd = H // nh
        self.num_heads = nh

        # vocab tile: largest 128-multiple divisor of V up to 2048
        tile_v = V
        for cand in (2048, 1024, 512, 256, 128):
            if V % cand == 0:
                tile_v = cand
                break
        self.tile_v = tile_v
        assert V % self.tile_v == 0

        keys = iter(jax.random.split(key, 4 + 6 * L))

        def nrm(shape):
            return 0.02 * jax.random.normal(next(keys), shape, jnp.float32)

        # BERT embeddings (kept f32; gather happens outside the kernels)
        self.word_emb = nrm((V, H))
        self.pos_emb = nrm((P, H))
        self.type_emb = nrm((2, H))
        self.emb_ln_g = jnp.ones((1, H), jnp.float32)
        self.emb_ln_b = jnp.zeros((1, H), jnp.float32)

        scale = 1.0 / float(hd) ** 0.5
        wqkv, wo, w1, w2 = [], [], [], []
        for _ in range(L):
            wq = nrm((H, H)) * scale            # attention scale folded into Q
            wk = nrm((H, H))
            wv = nrm((H, H))
            wqkv.append(jnp.concatenate([wq, wk, wv], axis=1))   # (H, 3H)
            wo.append(nrm((H, H)))
            w1.append(nrm((H, F)))
            w2.append(nrm((F, H)))

        self.enc = dict(
            wqkv=jnp.stack(wqkv).astype(jnp.bfloat16),
            bqkv=jnp.zeros((L, 1, 3 * H), jnp.float32),
            wo=jnp.stack(wo).astype(jnp.bfloat16),
            bo=jnp.zeros((L, 1, H), jnp.float32),
            ln1_g=jnp.ones((L, 1, H), jnp.float32),
            ln1_b=jnp.zeros((L, 1, H), jnp.float32),
            w1=jnp.stack(w1).astype(jnp.bfloat16),
            b1=jnp.zeros((L, 1, F), jnp.float32),
            w2=jnp.stack(w2).astype(jnp.bfloat16),
            b2=jnp.zeros((L, 1, H), jnp.float32),
            ln2_g=jnp.ones((L, 1, H), jnp.float32),
            ln2_b=jnp.zeros((L, 1, H), jnp.float32),
        )

        # cls head (nn.Linear(hidden_size, vocab_size)); weight bf16, bias f32
        self.w_cls = nrm((H, V)).astype(jnp.bfloat16)
        self.b_cls = jnp.zeros((1, V), jnp.float32)
        # nn.Dropout(0.1) is declared but never used in forward -> identity here.

    @staticmethod
    def generate_causal_mask(seq_len):
        mask = jnp.tril(jnp.ones((seq_len, seq_len), dtype=bool))
        return mask[None, None]  # (1, 1, S, S)

    def forward(self, x, y=None, attention_mask=None, causal_mask=None):
        B, S = x.shape

        # mask combination, exactly as in the torch module (logical_or)
        if causal_mask is not None and attention_mask is not None:
            combined = jnp.logical_or(causal_mask, attention_mask)
        elif causal_mask is not None:
            combined = causal_mask
        elif attention_mask is not None:
            combined = attention_mask
        else:
            combined = jnp.ones((1, 1, S, S), dtype=bool)
        combined = jnp.broadcast_to(combined, (B, 1, S, S))[:, 0]      # (B,S,S)
        mask_add = jnp.where(combined, 0.0, -1e9).astype(jnp.float32)  # additive

        # embeddings (gather is glue); token_type_ids assumed all zeros
        emb = (jnp.take(self.word_emb, x, axis=0)
               + self.pos_emb[:S][None, :, :]
               + self.type_emb[0][None, None, :])

        # two batch chunks keep both v7x TensorCores busy while only doubling
        # (not B-ing) the per-layer weight streaming; one chunk on odd batch.
        num_b_chunks = 2 if (B % 2 == 0 and B >= 2) else 1

        # all L encoder layers (incl. embedding LN) in one weight-streaming call
        h = encoder_stack(emb, mask_add, self.enc, self.num_heads,
                          self.emb_ln_g, self.emb_ln_b, num_b_chunks)   # bf16

        if y is not None:
            # fused vocab-tiled cross-entropy; ignore_index = -100 handled here
            y3 = y.reshape(B, S, 1).astype(jnp.int32)
            nll = cls_loss(h, y3, self.w_cls, self.b_cls, self.tile_v)  # (B,S,1)
            valid = (y != -100).astype(jnp.float32).reshape(B, S, 1)
            denom = jnp.maximum(jnp.sum(valid), 1.0)
            return jnp.sum(nll * valid) / denom

        # inference: vocab-tiled online logsumexp, then per-tile probs
        z = cls_logz(h, self.w_cls, self.b_cls, self.tile_v)
        return cls_probs(h, self.w_cls, self.b_cls, z, self.tile_v)


# ---------------------------------- main ---------------------------------------
if __name__ == "__main__":
    config = dict(
        vocab_size=256,          # multiples of 128 -> lane-dense stores
        hidden_size=128,
        num_hidden_layers=2,
        num_attention_heads=2,
        intermediate_size=512,
        max_position_embeddings=16,
    )

    key = jax.random.PRNGKey(0)
    k_param, k_x, k_y = jax.random.split(key, 3)
    model = LanguageModelPallas(config, k_param)

    B, S = 2, 8
    x = jax.random.randint(k_x, (B, S), 0, config["vocab_size"], dtype=jnp.int32)
    # padding mask (B,1,1,S), True = real token; second sample has 2 pad tokens
    attention_mask = jnp.ones((B, 1, 1, S), dtype=bool).at[1, 0, 0, 6:].set(False)
    causal_mask = LanguageModelPallas.generate_causal_mask(S)

    # inference path (y=None): softmax over vocab
    probs = model.forward(x, attention_mask=attention_mask, causal_mask=causal_mask)
    probs = jax.block_until_ready(probs)
    assert probs.shape == (B, S, config["vocab_size"])
    assert bool(jnp.all(jnp.isfinite(probs)))
    assert bool(jnp.allclose(jnp.sum(probs, axis=-1), 1.0, atol=1e-3))

    # training path (y given): scalar cross-entropy loss
    y = jax.random.randint(k_y, (B, S), 0, config["vocab_size"], dtype=jnp.int32)
    loss = jax.block_until_ready(
        model.forward(x, y=y, attention_mask=attention_mask, causal_mask=causal_mask))
    assert loss.shape == () and bool(jnp.isfinite(loss))

    print("KERNEL_OK")
</pallas_src>

<mosaic_0001>
module attributes {stable_mosaic.version = 11 : i64} {
  func.func @_encoder_stack_kernel(%arg0: i32, %arg1: i32, %arg2: memref<1x8x128xf32, #tpu.memory_space<vmem>>, %arg3: memref<1x8x8xf32, #tpu.memory_space<vmem>>, %arg4: memref<1x128xf32, #tpu.memory_space<vmem>>, %arg5: memref<1x128xf32, #tpu.memory_space<vmem>>, %arg6: memref<1x128x384xbf16, #tpu.memory_space<vmem>>, %arg7: memref<1x1x384xf32, #tpu.memory_space<vmem>>, %arg8: memref<1x128x128xbf16, #tpu.memory_space<vmem>>, %arg9: memref<1x1x128xf32, #tpu.memory_space<vmem>>, %arg10: memref<1x1x128xf32, #tpu.memory_space<vmem>>, %arg11: memref<1x1x128xf32, #tpu.memory_space<vmem>>, %arg12: memref<1x128x512xbf16, #tpu.memory_space<vmem>>, %arg13: memref<1x1x512xf32, #tpu.memory_space<vmem>>, %arg14: memref<1x512x128xbf16, #tpu.memory_space<vmem>>, %arg15: memref<1x1x128xf32, #tpu.memory_space<vmem>>, %arg16: memref<1x1x128xf32, #tpu.memory_space<vmem>>, %arg17: memref<1x1x128xf32, #tpu.memory_space<vmem>>, %arg18: memref<1x8x128xbf16, #tpu.memory_space<vmem>>, %arg19: memref<1x8x128xf32, #tpu.memory_space<vmem>>) attributes {dimension_semantics = [#tpu.dimension_semantics<parallel>, #tpu.dimension_semantics<arbitrary>], iteration_bounds = array<i64: 2, 2>, scalar_prefetch = 0 : i64, scratch_operands = 1 : i64, tpu.core_type = #tpu.core_type<tc>, window_params = [{transform_indices = @transform_0, window_bounds = array<i64: 1, 8, 128>}, {transform_indices = @transform_1, window_bounds = array<i64: 1, 8, 8>}, {pipeline_mode = #tpu.pipeline_mode<synchronous>, transform_indices = @transform_2, window_bounds = array<i64: 1, 128>}, {pipeline_mode = #tpu.pipeline_mode<synchronous>, transform_indices = @transform_3, window_bounds = array<i64: 1, 128>}, {transform_indices = @transform_4, window_bounds = array<i64: 1, 128, 384>}, {transform_indices = @transform_5, window_bounds = array<i64: 1, 1, 384>}, {transform_indices = @transform_6, window_bounds = array<i64: 1, 128, 128>}, {transform_indices = @transform_7, window_bounds = array<i64: 1, 1, 128>}, {transform_indices = @transform_8, window_bounds = array<i64: 1, 1, 128>}, {transform_indices = @transform_9, window_bounds = array<i64: 1, 1, 128>}, {transform_indices = @transform_10, window_bounds = array<i64: 1, 128, 512>}, {transform_indices = @transform_11, window_bounds = array<i64: 1, 1, 512>}, {transform_indices = @transform_12, window_bounds = array<i64: 1, 512, 128>}, {transform_indices = @transform_13, window_bounds = array<i64: 1, 1, 128>}, {transform_indices = @transform_14, window_bounds = array<i64: 1, 1, 128>}, {transform_indices = @transform_15, window_bounds = array<i64: 1, 1, 128>}, {transform_indices = @transform_16, window_bounds = array<i64: 1, 8, 128>}]} {
    %c0_i32 = arith.constant 0 : i32
    %0 = arith.cmpi eq, %arg1, %c0_i32 : i32
    %1 = arith.extui %0 : i1 to i32
    %c0_i32_0 = arith.constant 0 : i32
    %2 = arith.cmpi ne, %1, %c0_i32_0 : i32
    scf.if %2 {
      %c0_67 = arith.constant 0 : index
      %c0_68 = arith.constant 0 : index
      %c0_69 = arith.constant 0 : index
      %154 = vector.load %arg2[%c0_67, %c0_68, %c0_69] : memref<1x8x128xf32, #tpu.memory_space<vmem>>, vector<1x8x128xf32>
      %c0_70 = arith.constant 0 : index
      %c0_71 = arith.constant 0 : index
      %155 = vector.load %arg4[%c0_70, %c0_71] : memref<1x128xf32, #tpu.memory_space<vmem>>, vector<1x128xf32>
      %c0_72 = arith.constant 0 : index
      %c0_73 = arith.constant 0 : index
      %156 = vector.load %arg5[%c0_72, %c0_73] : memref<1x128xf32, #tpu.memory_space<vmem>>, vector<1x128xf32>
      %cst_74 = arith.constant dense<0.000000e+00> : vector<1x8xf32>
      %157 = vector.multi_reduction <add>, %154, %cst_74 [2] : vector<1x8x128xf32> to vector<1x8xf32>
      %158 = vector.shape_cast %157 : vector<1x8xf32> to vector<1x8x1xf32>
      %cst_75 = arith.constant 1.280000e+02 : f32
      %159 = vector.broadcast %cst_75 : f32 to vector<1x8x1xf32>
      %160 = arith.divf %158, %159 : vector<1x8x1xf32>
      %161 = vector.broadcast %160 : vector<1x8x1xf32> to vector<1x8x128xf32>
      %162 = arith.subf %154, %161 : vector<1x8x128xf32>
      %163 = arith.mulf %162, %162 : vector<1x8x128xf32>
      %cst_76 = arith.constant dense<0.000000e+00> : vector<1x8xf32>
      %164 = vector.multi_reduction <add>, %163, %cst_76 [2] : vector<1x8x128xf32> to vector<1x8xf32>
      %165 = vector.shape_cast %164 : vector<1x8xf32> to vector<1x8x1xf32>
      %cst_77 = arith.constant 1.280000e+02 : f32
      %166 = vector.broadcast %cst_77 : f32 to vector<1x8x1xf32>
      %167 = arith.divf %165, %166 : vector<1x8x1xf32>
      %168 = vector.broadcast %160 : vector<1x8x1xf32> to vector<1x8x128xf32>
      %169 = arith.subf %154, %168 : vector<1x8x128xf32>
      %cst_78 = arith.constant 9.99999996E-13 : f32
      %170 = vector.broadcast %cst_78 : f32 to vector<1x8x1xf32>
      %171 = arith.addf %167, %170 : vector<1x8x1xf32>
      %172 = math.rsqrt %171 : vector<1x8x1xf32>
      %173 = vector.broadcast %172 : vector<1x8x1xf32> to vector<1x8x128xf32>
      %174 = arith.mulf %169, %173 : vector<1x8x128xf32>
      %175 = vector.shape_cast %155 : vector<1x128xf32> to vector<1x1x128xf32>
      %176 = vector.broadcast %175 : vector<1x1x128xf32> to vector<1x8x128xf32>
      %177 = arith.mulf %174, %176 : vector<1x8x128xf32>
      %178 = vector.shape_cast %156 : vector<1x128xf32> to vector<1x1x128xf32>
      %179 = vector.broadcast %178 : vector<1x1x128xf32> to vector<1x8x128xf32>
      %180 = arith.addf %177, %179 : vector<1x8x128xf32>
      %c0_79 = arith.constant 0 : index
      %c0_80 = arith.constant 0 : index
      %c0_81 = arith.constant 0 : index
      %181 = vector.load %arg19[%c0_79, %c0_80, %c0_81] : memref<1x8x128xf32, #tpu.memory_space<vmem>>, vector<1x8x128xf32>
      tpu.vector_store %arg19[%c0_79, %c0_80, %c0_81], %180 {strides = array<i32>} : memref<1x8x128xf32, #tpu.memory_space<vmem>>, vector<1x8x128xf32>,
    } else {
    }
    %c0 = arith.constant 0 : index
    %c0_1 = arith.constant 0 : index
    %c0_2 = arith.constant 0 : index
    %3 = vector.load %arg19[%c0, %c0_1, %c0_2] : memref<1x8x128xf32, #tpu.memory_space<vmem>>, vector<1x8x128xf32>
    %4 = vector.shape_cast %3 : vector<1x8x128xf32> to vector<8x128xf32>
    %5 = arith.truncf %4 : vector<8x128xf32> to vector<8x128xbf16>
    %c0_3 = arith.constant 0 : index
    %c0_4 = arith.constant 0 : index
    %c0_5 = arith.constant 0 : index
    %6 = vector.load %arg6[%c0_3, %c0_4, %c0_5] : memref<1x128x384xbf16, #tpu.memory_space<vmem>>, vector<1x128x384xbf16>
    %7 = vector.shape_cast %6 : vector<1x128x384xbf16> to vector<128x384xbf16>
    %cst = arith.constant dense<0.000000e+00> : vector<8x384xf32>
    %8 = tpu.matmul %5, %7, %cst {dimension_numbers = #tpu.dot_dimension_numbers<[1], [0], [0], [1], [0, 0, 1, 1], [], []>} : vector<8x128xbf16>, vector<128x384xbf16>, vector<8x384xf32> -> vector<8x384xf32>
    %c0_6 = arith.constant 0 : index
    %c0_7 = arith.constant 0 : index
    %c0_8 = arith.constant 0 : index
    %9 = vector.load %arg7[%c0_6, %c0_7, %c0_8] : memref<1x1x384xf32, #tpu.memory_space<vmem>>, vector<1x1x384xf32>
    %10 = vector.shape_cast %9 : vector<1x1x384xf32> to vector<1x384xf32>
    %11 = vector.broadcast %10 : vector<1x384xf32> to vector<8x384xf32>
    %12 = arith.addf %8, %11 : vector<8x384xf32>
    %13 = arith.truncf %12 : vector<8x384xf32> to vector<8x384xbf16>
    %14 = vector.extract_strided_slice %13 {offsets = [0, 0], sizes = [8, 128], strides = [1, 1]} : vector<8x384xbf16> to vector<8x128xbf16>
    %15 = vector.extract_strided_slice %14 {offsets = [0, 0], sizes = [8, 64], strides = [1, 1]} : vector<8x128xbf16> to vector<8x64xbf16>
    %16 = vector.extract_strided_slice %14 {offsets = [0, 64], sizes = [8, 64], strides = [1, 1]} : vector<8x128xbf16> to vector<8x64xbf16>
    %17 = vector.shape_cast %15 : vector<8x64xbf16> to vector<1x8x64xbf16>
    %18 = vector.shape_cast %16 : vector<8x64xbf16> to vector<1x8x64xbf16>
    %19 = tpu.concatenate %17, %18 in 0 : vector<1x8x64xbf16>, vector<1x8x64xbf16> -> vector<2x8x64xbf16>
    %20 = vector.extract_strided_slice %13 {offsets = [0, 128], sizes = [8, 128], strides = [1, 1]} : vector<8x384xbf16> to vector<8x128xbf16>
    %21 = vector.extract_strided_slice %20 {offsets = [0, 0], sizes = [8, 64], strides = [1, 1]} : vector<8x128xbf16> to vector<8x64xbf16>
    %22 = vector.extract_strided_slice %20 {offsets = [0, 64], sizes = [8, 64], strides = [1, 1]} : vector<8x128xbf16> to vector<8x64xbf16>
    %23 = vector.shape_cast %21 : vector<8x64xbf16> to vector<1x8x64xbf16>
    %24 = vector.shape_cast %22 : vector<8x64xbf16> to vector<1x8x64xbf16>
    %25 = tpu.concatenate %23, %24 in 0 : vector<1x8x64xbf16>, vector<1x8x64xbf16> -> vector<2x8x64xbf16>
    %26 = vector.extract_strided_slice %13 {offsets = [0, 256], sizes = [8, 128], strides = [1, 1]} : vector<8x384xbf16> to vector<8x128xbf16>
    %27 = vector.extract_strided_slice %26 {offsets = [0, 0], sizes = [8, 64], strides = [1, 1]} : vector<8x128xbf16> to vector<8x64xbf16>
    %28 = vector.extract_strided_slice %26 {offsets = [0, 64], sizes = [8, 64], strides = [1, 1]} : vector<8x128xbf16> to vector<8x64xbf16>
    %29 = vector.shape_cast %27 : vector<8x64xbf16> to vector<1x8x64xbf16>
    %30 = vector.shape_cast %28 : vector<8x64xbf16> to vector<1x8x64xbf16>
    %31 = tpu.concatenate %29, %30 in 0 : vector<1x8x64xbf16>, vector<1x8x64xbf16> -> vector<2x8x64xbf16>
    "tpu.trace_start"() <{level = 10 : i32, message = "bqd,bkd->bqk"}> : () -> ()
    %cst_9 = arith.constant dense<0.000000e+00> : vector<2x8x8xf32>
    %32 = tpu.matmul %19, %25, %cst_9 {dimension_numbers = #tpu.dot_dimension_numbers<[2], [2], [1], [1], [0, 0, 0, 1, 1, 1], [0], [0]>} : vector<2x8x64xbf16>, vector<2x8x64xbf16>, vector<2x8x8xf32> -> vector<2x8x8xf32>
    "tpu.trace_stop"() : () -> ()
    %33 = vector.shape_cast %32 : vector<2x8x8xf32> to vector<2x1x8x8xf32>
    %c0_10 = arith.constant 0 : index
    %c0_11 = arith.constant 0 : index
    %c0_12 = arith.constant 0 : index
    %34 = vector.load %arg3[%c0_10, %c0_11, %c0_12] : memref<1x8x8xf32, #tpu.memory_space<vmem>>, vector<1x8x8xf32>
    %35 = vector.shape_cast %34 : vector<1x8x8xf32> to vector<1x1x8x8xf32>
    %36 = vector.broadcast %35 : vector<1x1x8x8xf32> to vector<2x1x8x8xf32>
    %37 = arith.addf %33, %36 : vector<2x1x8x8xf32>
    %38 = vector.shape_cast %37 : vector<2x1x8x8xf32> to vector<2x8x8xf32>
    %cst_13 = arith.constant dense<0xFF800000> : vector<2x8xf32>
    %39 = vector.multi_reduction <maximumf>, %38, %cst_13 [2] : vector<2x8x8xf32> to vector<2x8xf32>
    %40 = vector.shape_cast %39 : vector<2x8xf32> to vector<2x8x1xf32>
    %41 = vector.broadcast %40 : vector<2x8x1xf32> to vector<2x8x8xf32>
    %42 = arith.subf %38, %41 : vector<2x8x8xf32>
    %43 = math.exp %42 : vector<2x8x8xf32>
    %cst_14 = arith.constant dense<0.000000e+00> : vector<2x8xf32>
    %44 = vector.multi_reduction <add>, %43, %cst_14 [2] : vector<2x8x8xf32> to vector<2x8xf32>
    %45 = vector.shape_cast %44 : vector<2x8xf32> to vector<2x8x1xf32>
    %46 = tpu.reciprocal %45 {approx = true} : vector<2x8x1xf32> -> vector<2x8x1xf32>
    %47 = vector.broadcast %46 : vector<2x8x1xf32> to vector<2x8x8xf32>
    %48 = arith.mulf %43, %47 : vector<2x8x8xf32>
    %49 = arith.truncf %48 : vector<2x8x8xf32> to vector<2x8x8xbf16>
    "tpu.trace_start"() <{level = 10 : i32, message = "bqk,bkd->bqd"}> : () -> ()
    %cst_15 = arith.constant dense<0.000000e+00> : vector<2x8x64xf32>
    %50 = tpu.matmul %49, %31, %cst_15 {dimension_numbers = #tpu.dot_dimension_numbers<[2], [1], [1], [2], [0, 0, 0, 1, 1, 2], [0], [0]>} : vector<2x8x8xbf16>, vector<2x8x64xbf16>, vector<2x8x64xf32> -> vector<2x8x64xf32>
    "tpu.trace_stop"() : () -> ()
    %51 = vector.shape_cast %50 : vector<2x8x64xf32> to vector<2x1x8x64xf32>
    %52 = vector.extract_strided_slice %51 {offsets = [0, 0, 0, 0], sizes = [1, 1, 8, 64], strides = [1, 1, 1, 1]} : vector<2x1x8x64xf32> to vector<1x1x8x64xf32>
    %53 = vector.shape_cast %52 : vector<1x1x8x64xf32> to vector<1x8x64xf32>
    %54 = vector.extract_strided_slice %51 {offsets = [1, 0, 0, 0], sizes = [1, 1, 8, 64], strides = [1, 1, 1, 1]} : vector<2x1x8x64xf32> to vector<1x1x8x64xf32>
    %55 = vector.shape_cast %54 : vector<1x1x8x64xf32> to vector<1x8x64xf32>
    %56 = tpu.concatenate %53, %55 in 2 : vector<1x8x64xf32>, vector<1x8x64xf32> -> vector<1x8x128xf32>
    %57 = vector.shape_cast %56 : vector<1x8x128xf32> to vector<8x128xf32>
    %58 = arith.truncf %57 : vector<8x128xf32> to vector<8x128xbf16>
    %c0_16 = arith.constant 0 : index
    %c0_17 = arith.constant 0 : index
    %c0_18 = arith.constant 0 : index
    %59 = vector.load %arg8[%c0_16, %c0_17, %c0_18] : memref<1x128x128xbf16, #tpu.memory_space<vmem>>, vector<1x128x128xbf16>
    %60 = vector.shape_cast %59 : vector<1x128x128xbf16> to vector<128x128xbf16>
    %cst_19 = arith.constant dense<0.000000e+00> : vector<8x128xf32>
    %61 = tpu.matmul %58, %60, %cst_19 {dimension_numbers = #tpu.dot_dimension_numbers<[1], [0], [0], [1], [0, 0, 1, 1], [], []>} : vector<8x128xbf16>, vector<128x128xbf16>, vector<8x128xf32> -> vector<8x128xf32>
    %c0_20 = arith.constant 0 : index
    %c0_21 = arith.constant 0 : index
    %c0_22 = arith.constant 0 : index
    %62 = vector.load %arg9[%c0_20, %c0_21, %c0_22] : memref<1x1x128xf32, #tpu.memory_space<vmem>>, vector<1x1x128xf32>
    %63 = vector.shape_cast %62 : vector<1x1x128xf32> to vector<1x128xf32>
    %64 = vector.broadcast %63 : vector<1x128xf32> to vector<8x128xf32>
    %65 = arith.addf %61, %64 : vector<8x128xf32>
    %66 = arith.addf %4, %65 : vector<8x128xf32>
    %c0_23 = arith.constant 0 : index
    %c0_24 = arith.constant 0 : index
    %c0_25 = arith.constant 0 : index
    %67 = vector.load %arg10[%c0_23, %c0_24, %c0_25] : memref<1x1x128xf32, #tpu.memory_space<vmem>>, vector<1x1x128xf32>
    %68 = vector.shape_cast %67 : vector<1x1x128xf32> to vector<1x128xf32>
    %c0_26 = arith.constant 0 : index
    %c0_27 = arith.constant 0 : index
    %c0_28 = arith.constant 0 : index
    %69 = vector.load %arg11[%c0_26, %c0_27, %c0_28] : memref<1x1x128xf32, #tpu.memory_space<vmem>>, vector<1x1x128xf32>
    %70 = vector.shape_cast %69 : vector<1x1x128xf32> to vector<1x128xf32>
    %cst_29 = arith.constant dense<0.000000e+00> : vector<8xf32>
    %71 = vector.multi_reduction <add>, %66, %cst_29 [1] : vector<8x128xf32> to vector<8xf32>
    %72 = vector.shape_cast %71 : vector<8xf32> to vector<8x1xf32>
    %cst_30 = arith.constant 1.280000e+02 : f32
    %73 = vector.broadcast %cst_30 : f32 to vector<8x1xf32>
    %74 = arith.divf %72, %73 : vector<8x1xf32>
    %75 = vector.broadcast %74 : vector<8x1xf32> to vector<8x128xf32>
    %76 = arith.subf %66, %75 : vector<8x128xf32>
    %77 = arith.mulf %76, %76 : vector<8x128xf32>
    %cst_31 = arith.constant dense<0.000000e+00> : vector<8xf32>
    %78 = vector.multi_reduction <add>, %77, %cst_31 [1] : vector<8x128xf32> to vector<8xf32>
    %79 = vector.shape_cast %78 : vector<8xf32> to vector<8x1xf32>
    %cst_32 = arith.constant 1.280000e+02 : f32
    %80 = vector.broadcast %cst_32 : f32 to vector<8x1xf32>
    %81 = arith.divf %79, %80 : vector<8x1xf32>
    %82 = vector.broadcast %74 : vector<8x1xf32> to vector<8x128xf32>
    %83 = arith.subf %66, %82 : vector<8x128xf32>
    %cst_33 = arith.constant 9.99999996E-13 : f32
    %84 = vector.broadcast %cst_33 : f32 to vector<8x1xf32>
    %85 = arith.addf %81, %84 : vector<8x1xf32>
    %86 = math.rsqrt %85 : vector<8x1xf32>
    %87 = vector.broadcast %86 : vector<8x1xf32> to vector<8x128xf32>
    %88 = arith.mulf %83, %87 : vector<8x128xf32>
    %89 = vector.broadcast %68 : vector<1x128xf32> to vector<8x128xf32>
    %90 = arith.mulf %88, %89 : vector<8x128xf32>
    %91 = vector.broadcast %70 : vector<1x128xf32> to vector<8x128xf32>
    %92 = arith.addf %90, %91 : vector<8x128xf32>
    %93 = arith.truncf %92 : vector<8x128xf32> to vector<8x128xbf16>
    %c0_34 = arith.constant 0 : index
    %c0_35 = arith.constant 0 : index
    %c0_36 = arith.constant 0 : index
    %94 = vector.load %arg12[%c0_34, %c0_35, %c0_36] : memref<1x128x512xbf16, #tpu.memory_space<vmem>>, vector<1x128x512xbf16>
    %95 = vector.shape_cast %94 : vector<1x128x512xbf16> to vector<128x512xbf16>
    %cst_37 = arith.constant dense<0.000000e+00> : vector<8x512xf32>
    %96 = tpu.matmul %93, %95, %cst_37 {dimension_numbers = #tpu.dot_dimension_numbers<[1], [0], [0], [1], [0, 0, 1, 1], [], []>} : vector<8x128xbf16>, vector<128x512xbf16>, vector<8x512xf32> -> vector<8x512xf32>
    %c0_38 = arith.constant 0 : index
    %c0_39 = arith.constant 0 : index
    %c0_40 = arith.constant 0 : index
    %97 = vector.load %arg13[%c0_38, %c0_39, %c0_40] : memref<1x1x512xf32, #tpu.memory_space<vmem>>, vector<1x1x512xf32>
    %98 = vector.shape_cast %97 : vector<1x1x512xf32> to vector<1x512xf32>
    %99 = vector.broadcast %98 : vector<1x512xf32> to vector<8x512xf32>
    %100 = arith.addf %96, %99 : vector<8x512xf32>
    %101 = arith.mulf %100, %100 : vector<8x512xf32>
    %102 = arith.mulf %100, %101 : vector<8x512xf32>
    %cst_41 = arith.constant 4.471500e-02 : f32
    %103 = vector.broadcast %cst_41 : f32 to vector<8x512xf32>
    %104 = arith.mulf %103, %102 : vector<8x512xf32>
    %105 = arith.addf %100, %104 : vector<8x512xf32>
    %cst_42 = arith.constant 0.797884583 : f32
    %106 = vector.broadcast %cst_42 : f32 to vector<8x512xf32>
    %107 = arith.mulf %106, %105 : vector<8x512xf32>
    %108 = math.tanh %107 : vector<8x512xf32>
    %cst_43 = arith.constant 1.000000e+00 : f32
    %109 = vector.broadcast %cst_43 : f32 to vector<8x512xf32>
    %110 = arith.addf %109, %108 : vector<8x512xf32>
    %cst_44 = arith.constant 5.000000e-01 : f32
    %111 = vector.broadcast %cst_44 : f32 to vector<8x512xf32>
    %112 = arith.mulf %111, %110 : vector<8x512xf32>
    %113 = arith.mulf %100, %112 : vector<8x512xf32>
    %114 = arith.truncf %113 : vector<8x512xf32> to vector<8x512xbf16>
    %c0_45 = arith.constant 0 : index
    %c0_46 = arith.constant 0 : index
    %c0_47 = arith.constant 0 : index
    %115 = vector.load %arg14[%c0_45, %c0_46, %c0_47] : memref<1x512x128xbf16, #tpu.memory_space<vmem>>, vector<1x512x128xbf16>
    %116 = vector.shape_cast %115 : vector<1x512x128xbf16> to vector<512x128xbf16>
    %cst_48 = arith.constant dense<0.000000e+00> : vector<8x128xf32>
    %117 = tpu.matmul %114, %116, %cst_48 {dimension_numbers = #tpu.dot_dimension_numbers<[1], [0], [0], [1], [0, 0, 1, 1], [], []>} : vector<8x512xbf16>, vector<512x128xbf16>, vector<8x128xf32> -> vector<8x128xf32>
    %c0_49 = arith.constant 0 : index
    %c0_50 = arith.constant 0 : index
    %c0_51 = arith.constant 0 : index
    %118 = vector.load %arg15[%c0_49, %c0_50, %c0_51] : memref<1x1x128xf32, #tpu.memory_space<vmem>>, vector<1x1x128xf32>
    %119 = vector.shape_cast %118 : vector<1x1x128xf32> to vector<1x128xf32>
    %120 = vector.broadcast %119 : vector<1x128xf32> to vector<8x128xf32>
    %121 = arith.addf %117, %120 : vector<8x128xf32>
    %122 = arith.addf %92, %121 : vector<8x128xf32>
    %c0_52 = arith.constant 0 : index
    %c0_53 = arith.constant 0 : index
    %c0_54 = arith.constant 0 : index
    %123 = vector.load %arg16[%c0_52, %c0_53, %c0_54] : memref<1x1x128xf32, #tpu.memory_space<vmem>>, vector<1x1x128xf32>
    %124 = vector.shape_cast %123 : vector<1x1x128xf32> to vector<1x128xf32>
    %c0_55 = arith.constant 0 : index
    %c0_56 = arith.constant 0 : index
    %c0_57 = arith.constant 0 : index
    %125 = vector.load %arg17[%c0_55, %c0_56, %c0_57] : memref<1x1x128xf32, #tpu.memory_space<vmem>>, vector<1x1x128xf32>
    %126 = vector.shape_cast %125 : vector<1x1x128xf32> to vector<1x128xf32>
    %cst_58 = arith.constant dense<0.000000e+00> : vector<8xf32>
    %127 = vector.multi_reduction <add>, %122, %cst_58 [1] : vector<8x128xf32> to vector<8xf32>
    %128 = vector.shape_cast %127 : vector<8xf32> to vector<8x1xf32>
    %cst_59 = arith.constant 1.280000e+02 : f32
    %129 = vector.broadcast %cst_59 : f32 to vector<8x1xf32>
    %130 = arith.divf %128, %129 : vector<8x1xf32>
    %131 = vector.broadcast %130 : vector<8x1xf32> to vector<8x128xf32>
    %132 = arith.subf %122, %131 : vector<8x128xf32>
    %133 = arith.mulf %132, %132 : vector<8x128xf32>
    %cst_60 = arith.constant dense<0.000000e+00> : vector<8xf32>
    %134 = vector.multi_reduction <add>, %133, %cst_60 [1] : vector<8x128xf32> to vector<8xf32>
    %135 = vector.shape_cast %134 : vector<8xf32> to vector<8x1xf32>
    %cst_61 = arith.constant 1.280000e+02 : f32
    %136 = vector.broadcast %cst_61 : f32 to vector<8x1xf32>
    %137 = arith.divf %135, %136 : vector<8x1xf32>
    %138 = vector.broadcast %130 : vector<8x1xf32> to vector<8x128xf32>
    %139 = arith.subf %122, %138 : vector<8x128xf32>
    %cst_62 = arith.constant 9.99999996E-13 : f32
    %140 = vector.broadcast %cst_62 : f32 to vector<8x1xf32>
    %141 = arith.addf %137, %140 : vector<8x1xf32>
    %142 = math.rsqrt %141 : vector<8x1xf32>
    %143 = vector.broadcast %142 : vector<8x1xf32> to vector<8x128xf32>
    %144 = arith.mulf %139, %143 : vector<8x128xf32>
    %145 = vector.broadcast %124 : vector<1x128xf32> to vector<8x128xf32>
    %146 = arith.mulf %144, %145 : vector<8x128xf32>
    %147 = vector.broadcast %126 : vector<1x128xf32> to vector<8x128xf32>
    %148 = arith.addf %146, %147 : vector<8x128xf32>
    %149 = vector.shape_cast %148 : vector<8x128xf32> to vector<1x8x128xf32>
    %c0_63 = arith.constant 0 : index
    %c0_64 = arith.constant 0 : index
    %c0_65 = arith.constant 0 : index
    %150 = vector.load %arg19[%c0_63, %c0_64, %c0_65] : memref<1x8x128xf32, #tpu.memory_space<vmem>>, vector<1x8x128xf32>
    tpu.vector_store %arg19[%c0_63, %c0_64, %c0_65], %149 {strides = array<i32>} : memref<1x8x128xf32, #tpu.memory_space<vmem>>, vector<1x8x128xf32>,
    %c1_i32 = arith.constant 1 : i32
    %151 = arith.cmpi eq, %arg1, %c1_i32 : i32
    %152 = arith.extui %151 : i1 to i32
    %c0_i32_66 = arith.constant 0 : i32
    %153 = arith.cmpi ne, %152, %c0_i32_66 : i32
    scf.if %153 {
      %154 = vector.shape_cast %148 : vector<8x128xf32> to vector<1x8x128xf32>
      %155 = arith.truncf %154 : vector<1x8x128xf32> to vector<1x8x128xbf16>
      %c0_67 = arith.constant 0 : index
      %c0_68 = arith.constant 0 : index
      %c0_69 = arith.constant 0 : index
      %156 = vector.load %arg18[%c0_67, %c0_68, %c0_69] : memref<1x8x128xbf16, #tpu.memory_space<vmem>>, vector<1x8x128xbf16>
      tpu.vector_store %arg18[%c0_67, %c0_68, %c0_69], %155 {strides = array<i32>} : memref<1x8x128xbf16, #tpu.memory_space<vmem>>, vector<1x8x128xbf16>,
    } else {
    }
    return
  }
  func.func @transform_0(%arg0: i32, %arg1: i32) -> (i32, i32, i32) {
    %c0_i32 = arith.constant 0 : i32
    %c0_i32_0 = arith.constant 0 : i32
    %c0_i32_1 = arith.constant 0 : i32
    return %arg0, %c0_i32, %c0_i32_0 : i32, i32, i32
  }
  func.func @transform_1(%arg0: i32, %arg1: i32) -> (i32, i32, i32) {
    %c0_i32 = arith.constant 0 : i32
    %c0_i32_0 = arith.constant 0 : i32
    %c0_i32_1 = arith.constant 0 : i32
    return %arg0, %c0_i32, %c0_i32_0 : i32, i32, i32
  }
  func.func @transform_2(%arg0: i32, %arg1: i32) -> (i32, i32) {
    %c0_i32 = arith.constant 0 : i32
    %c0_i32_0 = arith.constant 0 : i32
    %c0_i32_1 = arith.constant 0 : i32
    return %c0_i32, %c0_i32_0 : i32, i32
  }
  func.func @transform_3(%arg0: i32, %arg1: i32) -> (i32, i32) {
    %c0_i32 = arith.constant 0 : i32
    %c0_i32_0 = arith.constant 0 : i32
    %c0_i32_1 = arith.constant 0 : i32
    return %c0_i32, %c0_i32_0 : i32, i32
  }
  func.func @transform_4(%arg0: i32, %arg1: i32) -> (i32, i32, i32) {
    %c0_i32 = arith.constant 0 : i32
    %c0_i32_0 = arith.constant 0 : i32
    %c0_i32_1 = arith.constant 0 : i32
    return %arg1, %c0_i32, %c0_i32_0 : i32, i32, i32
  }
  func.func @transform_5(%arg0: i32, %arg1: i32) -> (i32, i32, i32) {
    %c0_i32 = arith.constant 0 : i32
    %c0_i32_0 = arith.constant 0 : i32
    %c0_i32_1 = arith.constant 0 : i32
    return %arg1, %c0_i32, %c0_i32_0 : i32, i32, i32
  }
  func.func @transform_6(%arg0: i32, %arg1: i32) -> (i32, i32, i32) {
    %c0_i32 = arith.constant 0 : i32
    %c0_i32_0 = arith.constant 0 : i32
    %c0_i32_1 = arith.constant 0 : i32
    return %arg1, %c0_i32, %c0_i32_0 : i32, i32, i32
  }
  func.func @transform_7(%arg0: i32, %arg1: i32) -> (i32, i32, i32) {
    %c0_i32 = arith.constant 0 : i32
    %c0_i32_0 = arith.constant 0 : i32
    %c0_i32_1 = arith.constant 0 : i32
    return %arg1, %c0_i32, %c0_i32_0 : i32, i32, i32
  }
  func.func @transform_8(%arg0: i32, %arg1: i32) -> (i32, i32, i32) {
    %c0_i32 = arith.constant 0 : i32
    %c0_i32_0 = arith.constant 0 : i32
    %c0_i32_1 = arith.constant 0 : i32
    return %arg1, %c0_i32, %c0_i32_0 : i32, i32, i32
  }
  func.func @transform_9(%arg0: i32, %arg1: i32) -> (i32, i32, i32) {
    %c0_i32 = arith.constant 0 : i32
    %c0_i32_0 = arith.constant 0 : i32
    %c0_i32_1 = arith.constant 0 : i32
    return %arg1, %c0_i32, %c0_i32_0 : i32, i32, i32
  }
  func.func @transform_10(%arg0: i32, %arg1: i32) -> (i32, i32, i32) {
    %c0_i32 = arith.constant 0 : i32
    %c0_i32_0 = arith.constant 0 : i32
    %c0_i32_1 = arith.constant 0 : i32
    return %arg1, %c0_i32, %c0_i32_0 : i32, i32, i32
  }
  func.func @transform_11(%arg0: i32, %arg1: i32) -> (i32, i32, i32) {
    %c0_i32 = arith.constant 0 : i32
    %c0_i32_0 = arith.constant 0 : i32
    %c0_i32_1 = arith.constant 0 : i32
    return %arg1, %c0_i32, %c0_i32_0 : i32, i32, i32
  }
  func.func @transform_12(%arg0: i32, %arg1: i32) -> (i32, i32, i32) {
    %c0_i32 = arith.constant 0 : i32
    %c0_i32_0 = arith.constant 0 : i32
    %c0_i32_1 = arith.constant 0 : i32
    return %arg1, %c0_i32, %c0_i32_0 : i32, i32, i32
  }
  func.func @transform_13(%arg0: i32, %arg1: i32) -> (i32, i32, i32) {
    %c0_i32 = arith.constant 0 : i32
    %c0_i32_0 = arith.constant 0 : i32
    %c0_i32_1 = arith.constant 0 : i32
    return %arg1, %c0_i32, %c0_i32_0 : i32, i32, i32
  }
  func.func @transform_14(%arg0: i32, %arg1: i32) -> (i32, i32, i32) {
    %c0_i32 = arith.constant 0 : i32
    %c0_i32_0 = arith.constant 0 : i32
    %c0_i32_1 = arith.constant 0 : i32
    return %arg1, %c0_i32, %c0_i32_0 : i32, i32, i32
  }
  func.func @transform_15(%arg0: i32, %arg1: i32) -> (i32, i32, i32) {
    %c0_i32 = arith.constant 0 : i32
    %c0_i32_0 = arith.constant 0 : i32
    %c0_i32_1 = arith.constant 0 : i32
    return %arg1, %c0_i32, %c0_i32_0 : i32, i32, i32
  }
  func.func @transform_16(%arg0: i32, %arg1: i32) -> (i32, i32, i32) {
    %c0_i32 = arith.constant 0 : i32
    %c0_i32_0 = arith.constant 0 : i32
    %c0_i32_1 = arith.constant 0 : i32
    return %arg0, %c0_i32, %c0_i32_0 : i32, i32, i32
  }
}

</mosaic_0001>

<llo_original>
// kernel: tpu_custom_call.1
$region0: #{tpu_custom_call.1}
  #allocation0 [shape = 'u32[]', space=smem, size = 0x4, offset = 0x4, fixed_abs, tag = 'smem constant byte address 0x4 - core index']
  #allocation1 [shape = 'u32[72,128]{1,0:T(1,128)}', space=vmem, size = 0x9000, scoped, tag = 'internal scratch']
  #allocation2 [shape = 'f32[1,8,128]{2,1,0:T(8,128)}', space=vmem, size = 0x1000, scoped, tag = 'scratch operand']
  %s0 = inlined_call_operand.hbm [shape: f32[2,8,128], index: 0, kind: input, shape index: {}]
  %s1 = inlined_call_operand.hbm [shape: f32[2,8,8], index: 1, kind: input, shape index: {}]
  %s2 = inlined_call_operand.hbm [shape: f32[1,128], index: 2, kind: input, shape index: {}]
  %s3 = inlined_call_operand.hbm [shape: f32[1,128], index: 3, kind: input, shape index: {}]
  %s4 = inlined_call_operand.hbm [shape: bf16[2,128,384], index: 4, kind: input, shape index: {}]
  %s5 = inlined_call_operand.hbm [shape: f32[2,1,384], index: 5, kind: input, shape index: {}]
  %s6 = inlined_call_operand.hbm [shape: bf16[2,128,128], index: 6, kind: input, shape index: {}]
  %s7 = inlined_call_operand.vmem [shape: f32[2,1,128], index: 7, kind: input, shape index: {}]
  %s8 = inlined_call_operand.hbm [shape: f32[2,1,128], index: 8, kind: input, shape index: {}]
  %s9 = inlined_call_operand.hbm [shape: f32[2,1,128], index: 9, kind: input, shape index: {}]
  %s10 = inlined_call_operand.hbm [shape: bf16[2,128,512], index: 10, kind: input, shape index: {}]
  %s11 = inlined_call_operand.vmem [shape: f32[2,1,512], index: 11, kind: input, shape index: {}]
  %s12 = inlined_call_operand.hbm [shape: bf16[2,512,128], index: 12, kind: input, shape index: {}]
  %s13 = inlined_call_operand.vmem [shape: f32[2,1,128], index: 13, kind: input, shape index: {}]
  %s14 = inlined_call_operand.hbm [shape: f32[2,1,128], index: 14, kind: input, shape index: {}]
  %s15 = inlined_call_operand.vmem [shape: f32[2,1,128], index: 15, kind: input, shape index: {}]
  %s16 = inlined_call_operand.hbm [shape: bf16[2,8,128], index: 16, kind: output, shape index: {}]
  %s17 = sld [smem:[#allocation0]]
  $region153: #{tpu_custom_call.1} parent=0
    _
  %s19 = ssub.s32 1, %s17
  %s20 = scalar_select 0, %s19, %s17
  $region1: #{tpu_custom_call.1} parent=0
    #allocation3 [shape = 'u8[8192]{0}', space=vmem, size = 0x2000, scoped, tag = 'input window, operand 0']
    #allocation4 [shape = 's32[2]{0}', space=sflag, size = 0x8, scoped, tag = 'scoped memory for tpu_custom_call.1']
    #allocation5 [shape = 's32[2]{0}', space=sflag, size = 0x8, scoped, tag = 'scoped memory for tpu_custom_call.1']
    #allocation6 [shape = 'u8[8192]{0}', space=vmem, size = 0x2000, scoped, tag = 'input window, operand 1']
    #allocation7 [shape = 's32[2]{0}', space=sflag, size = 0x8, scoped, tag = 'scoped memory for tpu_custom_call.1']
    #allocation8 [shape = 'u8[512]{0}', space=vmem, size = 0x400, scoped, tag = 'input window, operand 2, single buffered']
    #allocation9 [shape = 'u8[512]{0}', space=vmem, size = 0x400, scoped, tag = 'input window, operand 3, single buffered']
    #allocation10 [shape = 's32[1]{0}', space=sflag, size = 0x4, scoped, tag = 'scoped memory for tpu_custom_call.1']
    #allocation11 [shape = 'u8[196608]{0}', space=vmem, size = 0x30000, scoped, tag = 'input window, operand 4']
    #allocation12 [shape = 'u8[3072]{0}', space=vmem, size = 0xc00, scoped, tag = 'input window, operand 5']
    #allocation13 [shape = 'u8[65536]{0}', space=vmem, size = 0x10000, scoped, tag = 'input window, operand 6']
    #allocation14 [shape = 'u8[1024]{0}', space=vmem, size = 0x400, scoped, tag = 'input window, operand 8']
    #allocation15 [shape = 'u8[1024]{0}', space=vmem, size = 0x400, scoped, tag = 'input window, operand 9']
    #allocation16 [shape = 'u8[262144]{0}', space=vmem, size = 0x40000, scoped, tag = 'input window, operand 10']
    #allocation17 [shape = 'u8[262144]{0}', space=vmem, size = 0x40000, scoped, tag = 'input window, operand 12']
    #allocation18 [shape = 'u8[1024]{0}', space=vmem, size = 0x400, scoped, tag = 'input window, operand 14']
    #allocation19 [shape = 'u8[4096]{0}', space=vmem, size = 0x1000, scoped, tag = 'output window, operand 0']
    %21 = vsyncpa [#allocation4], 0
    %s22 = scalar_lea.sflag [#allocation4], 1
    %23 = vsyncpa %s22, 0
    %24 = vsyncpa [#allocation7], 0
    %s25 = scalar_lea.sflag [#allocation7], 1
    %26 = vsyncpa %s25, 0
    %27 = vsyncpa [#allocation10], 0
    %28 = vsyncpa [#allocation5], 0
    %s29 = scalar_lea.sflag [#allocation5], 1
    %30 = vsyncpa %s29, 0
    loop: start=0, step=1, limit=6
    $region2: #{tpu_custom_call.1} parent=1 // loop_pre_header
      _
    $region3: #{tpu_custom_call.1} parent=1 // loop_header
      %s32 = sphi 0, %s36
      %p33 = scmp.ge.s32.totalorder %s32, 6
      %s39 = sphi 0, %s51
      %s40 = sphi 0, %s47
      %s41 = sphi 0, %s39
      %s42 = sphi 0, %s40
      %s43 = sphi 0, %s41
      %s44 = sphi 0, %s42
      %s54 = sphi 0, %s56
      %s57 = sphi 0, %s54
      %s58 = sphi 0, %s57
      %s74 = sphi 0, %s58
      %s80 = sphi 0, %s82
      %s83 = sphi 0, %s80
      %s84 = sphi 0, %s83
      %s100 = sphi 0, %s84
      %s104 = sphi 0, %s104
      %s106 = sphi 0, %s104
      %s107 = sphi 0, %s106
      %s121 = sphi 0, %s107
      %s125 = sphi 0, %s125
      %s127 = sphi 0, %s125
      %s128 = sphi 0, %s127
      %s142 = sphi 0, %s128
      %s148 = sphi 0, %s150
      %s151 = sphi 0, %s148
      %s152 = sphi 0, %s151
      %s168 = sphi 0, %s152
      %s174 = sphi 0, %s176
      %s177 = sphi 0, %s174
      %s178 = sphi 0, %s177
      %s194 = sphi 0, %s178
      %s200 = sphi 0, %s202
      %s203 = sphi 0, %s200
      %s204 = sphi 0, %s203
      %s220 = sphi 0, %s204
      %s226 = sphi 0, %s228
      %s229 = sphi 0, %s226
      %s230 = sphi 0, %s229
      %s246 = sphi 0, %s230
      %s252 = sphi 0, %s254
      %s255 = sphi 0, %s252
      %s256 = sphi 0, %s255
      %s272 = sphi 0, %s256
      %s278 = sphi 0, %s280
      %s281 = sphi 0, %s278
      %s282 = sphi 0, %s281
      %s298 = sphi 0, %s282
      %s304 = sphi 0, %s306
      %s307 = sphi 0, %s304
      %s308 = sphi 0, %s307
      %s324 = sphi 0, %s308
      %s330 = sphi 0, %s332
      %s333 = sphi 0, %s330
      %s334 = sphi 0, %s333
      %s350 = sphi 0, %s334
      %s356 = sphi 0, %s358
      %s359 = sphi 0, %s356
      %s360 = sphi 0, %s359
      %s376 = sphi 0, %s360
      %s382 = sphi 0, %s384
      %s385 = sphi 0, %s382
      %s386 = sphi 0, %s385
      %s402 = sphi 0, %s386
      %s408 = sphi 0, %s410
      %s411 = sphi 0, %s408
      %s412 = sphi 0, %s411
      %s428 = sphi 0, %s412
      %s434 = sphi 0, %s436
      %s437 = sphi 0, %s434
      %s438 = sphi 0, %s437
      %s454 = sphi 0, %s438
      %s460 = sphi 0, %s462
      %s463 = sphi 0, %s460
      %s464 = sphi 0, %s463
      %s480 = sphi 0, %s464
    $region4: #{tpu_custom_call.1} parent=1 // loop_header_branch
      %35 = sbr.rel (%p33) target = $region8
    $region5: #{tpu_custom_call.1} parent=1 // loop_body
      %s37 = ssub.s32 %s32, 1
      %s38 = ssub.s32 %s32, 2
      %s45 = sadd.s32 1, %s40
      %p46 = scmp.ge.s32.totalorder %s45, 2
      %s47 = scalar_select %p46, 0, %s45
      %s48 = sadd.s32 1, %s39
      %s49 = scalar_select %p46, %s48, %s39
      %p50 = scmp.ge.s32.totalorder %s49, 2
      %s51 = scalar_select %p50, 0, %s49
      %s52 = ssub.s32 %s39, %s51
      %p53 = scmp.eq.s32.totalorder %s52, 0
      %s55 = sadd.s32 %s54, 1
      %s56 = scalar_select %p53, %s54, %s55
      %p59 = pneg %p53
      %p60 = scmp.eq.s32.totalorder %s32, 3
      %p61 = por %p59, %p60
      %p62 = scmp.ne.s32.totalorder %s54, %s57
      %p63 = scmp.eq.s32.totalorder %s32, 0
      %p64 = por %p62, %p63
      %p65 = scmp.ne.s32.totalorder %s54, %s57
      %p66 = scmp.eq.s32.totalorder %s37, 3
      %p67 = por %p65, %p66
      %p68 = scmp.ne.s32.totalorder %s57, %s58
      %p69 = scmp.eq.s32.totalorder %s37, 0
      %p70 = por %p68, %p69
      %p71 = scmp.ne.s32.totalorder %s57, %s58
      %p72 = scmp.eq.s32.totalorder %s38, 3
      %p73 = por %p71, %p72
      %p75 = scmp.ne.s32.totalorder %s58, %s74
      %p76 = scmp.eq.s32.totalorder %s38, 0
      %p77 = por %p75, %p76
      %s78 = ssub.s32 %s39, %s51
      %p79 = scmp.eq.s32.totalorder %s78, 0
      %s81 = sadd.s32 %s80, 1
      %s82 = scalar_select %p79, %s80, %s81
      %p85 = pneg %p79
      %p86 = scmp.eq.s32.totalorder %s32, 3
      %p87 = por %p85, %p86
      %p88 = scmp.ne.s32.totalorder %s80, %s83
      %p89 = scmp.eq.s32.totalorder %s32, 0
      %p90 = por %p88, %p89
      %p91 = scmp.ne.s32.totalorder %s80, %s83
      %p92 = scmp.eq.s32.totalorder %s37, 3
      %p93 = por %p91, %p92
      %p94 = scmp.ne.s32.totalorder %s83, %s84
      %p95 = scmp.eq.s32.totalorder %s37, 0
      %p96 = por %p94, %p95
      %p97 = scmp.ne.s32.totalorder %s83, %s84
      %p98 = scmp.eq.s32.totalorder %s38, 3
      %p99 = por %p97, %p98
      %p101 = scmp.ne.s32.totalorder %s84, %s100
      %p102 = scmp.eq.s32.totalorder %s38, 0
      %p103 = por %p101, %p102
      %s105 = sadd.s32 %s104, 1
      %p108 = scmp.eq.s32.totalorder %s32, 3
      %p109 = scmp.ne.s32.totalorder %s104, %s106
      %p110 = scmp.eq.s32.totalorder %s32, 0
      %p111 = por %p109, %p110
      %p112 = scmp.ne.s32.totalorder %s104, %s106
      %p113 = scmp.eq.s32.totalorder %s37, 3
      %p114 = por %p112, %p113
      %p115 = scmp.ne.s32.totalorder %s106, %s107
      %p116 = scmp.eq.s32.totalorder %s37, 0
      %p117 = por %p115, %p116
      %p118 = scmp.ne.s32.totalorder %s106, %s107
      %p119 = scmp.eq.s32.totalorder %s38, 3
      %p120 = por %p118, %p119
      %p122 = scmp.ne.s32.totalorder %s107, %s121
      %p123 = scmp.eq.s32.totalorder %s38, 0
      %p124 = por %p122, %p123
      %s126 = sadd.s32 %s125, 1
      %p129 = scmp.eq.s32.totalorder %s32, 3
      %p130 = scmp.ne.s32.totalorder %s125, %s127
      %p131 = scmp.eq.s32.totalorder %s32, 0
      %p132 = por %p130, %p131
      %p133 = scmp.ne.s32.totalorder %s125, %s127
      %p134 = scmp.eq.s32.totalorder %s37, 3
      %p135 = por %p133, %p134
      %p136 = scmp.ne.s32.totalorder %s127, %s128
      %p137 = scmp.eq.s32.totalorder %s37, 0
      %p138 = por %p136, %p137
      %p139 = scmp.ne.s32.totalorder %s127, %s128
      %p140 = scmp.eq.s32.totalorder %s38, 3
      %p141 = por %p139, %p140
      %p143 = scmp.ne.s32.totalorder %s128, %s142
      %p144 = scmp.eq.s32.totalorder %s38, 0
      %p145 = por %p143, %p144
      %s146 = ssub.s32 %s40, %s47
      %p147 = scmp.eq.s32.totalorder %s146, 0
      %s149 = sadd.s32 %s148, 1
      %s150 = scalar_select %p147, %s148, %s149
      %p153 = pneg %p147
      %p154 = scmp.eq.s32.totalorder %s32, 3
      %p155 = por %p153, %p154
      %p156 = scmp.ne.s32.totalorder %s148, %s151
      %p157 = scmp.eq.s32.totalorder %s32, 0
      %p158 = por %p156, %p157
      %p159 = scmp.ne.s32.totalorder %s148, %s151
      %p160 = scmp.eq.s32.totalorder %s37, 3
      %p161 = por %p159, %p160
      %p162 = scmp.ne.s32.totalorder %s151, %s152
      %p163 = scmp.eq.s32.totalorder %s37, 0
      %p164 = por %p162, %p163
      %p165 = scmp.ne.s32.totalorder %s151, %s152
      %p166 = scmp.eq.s32.totalorder %s38, 3
      %p167 = por %p165, %p166
      %p169 = scmp.ne.s32.totalorder %s152, %s168
      %p170 = scmp.eq.s32.totalorder %s38, 0
      %p171 = por %p169, %p170
      %s172 = ssub.s32 %s40, %s47
      %p173 = scmp.eq.s32.totalorder %s172, 0
      %s175 = sadd.s32 %s174, 1
      %s176 = scalar_select %p173, %s174, %s175
      %p179 = pneg %p173
      %p180 = scmp.eq.s32.totalorder %s32, 3
      %p181 = por %p179, %p180
      %p182 = scmp.ne.s32.totalorder %s174, %s177
      %p183 = scmp.eq.s32.totalorder %s32, 0
      %p184 = por %p182, %p183
      %p185 = scmp.ne.s32.totalorder %s174, %s177
      %p186 = scmp.eq.s32.totalorder %s37, 3
      %p187 = por %p185, %p186
      %p188 = scmp.ne.s32.totalorder %s177, %s178
      %p189 = scmp.eq.s32.totalorder %s37, 0
      %p190 = por %p188, %p189
      %p191 = scmp.ne.s32.totalorder %s177, %s178
      %p192 = scmp.eq.s32.totalorder %s38, 3
      %p193 = por %p191, %p192
      %p195 = scmp.ne.s32.totalorder %s178, %s194
      %p196 = scmp.eq.s32.totalorder %s38, 0
      %p197 = por %p195, %p196
      %s198 = ssub.s32 %s40, %s47
      %p199 = scmp.eq.s32.totalorder %s198, 0
      %s201 = sadd.s32 %s200, 1
      %s202 = scalar_select %p199, %s200, %s201
      %p205 = pneg %p199
      %p206 = scmp.eq.s32.totalorder %s32, 3
      %p207 = por %p205, %p206
      %p208 = scmp.ne.s32.totalorder %s200, %s203
      %p209 = scmp.eq.s32.totalorder %s32, 0
      %p210 = por %p208, %p209
      %p211 = scmp.ne.s32.totalorder %s200, %s203
      %p212 = scmp.eq.s32.totalorder %s37, 3
      %p213 = por %p211, %p212
      %p214 = scmp.ne.s32.totalorder %s203, %s204
      %p215 = scmp.eq.s32.totalorder %s37, 0
      %p216 = por %p214, %p215
      %p217 = scmp.ne.s32.totalorder %s203, %s204
      %p218 = scmp.eq.s32.totalorder %s38, 3
      %p219 = por %p217, %p218
      %p221 = scmp.ne.s32.totalorder %s204, %s220
      %p222 = scmp.eq.s32.totalorder %s38, 0
      %p223 = por %p221, %p222
      %s224 = ssub.s32 %s40, %s47
      %p225 = scmp.eq.s32.totalorder %s224, 0
      %s227 = sadd.s32 %s226, 1
      %s228 = scalar_select %p225, %s226, %s227
      %p231 = pneg %p225
      %p232 = scmp.eq.s32.totalorder %s32, 3
      %p233 = por %p231, %p232
      %p234 = scmp.ne.s32.totalorder %s226, %s229
      %p235 = scmp.eq.s32.totalorder %s32, 0
      %p236 = por %p234, %p235
      %p237 = scmp.ne.s32.totalorder %s226, %s229
      %p238 = scmp.eq.s32.totalorder %s37, 3
      %p239 = por %p237, %p238
      %p240 = scmp.ne.s32.totalorder %s229, %s230
      %p241 = scmp.eq.s32.totalorder %s37, 0
      %p242 = por %p240, %p241
      %p243 = scmp.ne.s32.totalorder %s229, %s230
      %p244 = scmp.eq.s32.totalorder %s38, 3
      %p245 = por %p243, %p244
      %p247 = scmp.ne.s32.totalorder %s230, %s246
      %p248 = scmp.eq.s32.totalorder %s38, 0
      %p249 = por %p247, %p248
      %s250 = ssub.s32 %s40, %s47
      %p251 = scmp.eq.s32.totalorder %s250, 0
      %s253 = sadd.s32 %s252, 1
      %s254 = scalar_select %p251, %s252, %s253
      %p257 = pneg %p251
      %p258 = scmp.eq.s32.totalorder %s32, 3
      %p259 = por %p257, %p258
      %p260 = scmp.ne.s32.totalorder %s252, %s255
      %p261 = scmp.eq.s32.totalorder %s32, 0
      %p262 = por %p260, %p261
      %p263 = scmp.ne.s32.totalorder %s252, %s255
      %p264 = scmp.eq.s32.totalorder %s37, 3
      %p265 = por %p263, %p264
      %p266 = scmp.ne.s32.totalorder %s255, %s256
      %p267 = scmp.eq.s32.totalorder %s37, 0
      %p268 = por %p266, %p267
      %p269 = scmp.ne.s32.totalorder %s255, %s256
      %p270 = scmp.eq.s32.totalorder %s38, 3
      %p271 = por %p269, %p270
      %p273 = scmp.ne.s32.totalorder %s256, %s272
      %p274 = scmp.eq.s32.totalorder %s38, 0
      %p275 = por %p273, %p274
      %s276 = ssub.s32 %s40, %s47
      %p277 = scmp.eq.s32.totalorder %s276, 0
      %s279 = sadd.s32 %s278, 1
      %s280 = scalar_select %p277, %s278, %s279
      %p283 = pneg %p277
      %p284 = scmp.eq.s32.totalorder %s32, 3
      %p285 = por %p283, %p284
      %p286 = scmp.ne.s32.totalorder %s278, %s281
      %p287 = scmp.eq.s32.totalorder %s32, 0
      %p288 = por %p286, %p287
      %p289 = scmp.ne.s32.totalorder %s278, %s281
      %p290 = scmp.eq.s32.totalorder %s37, 3
      %p291 = por %p289, %p290
      %p292 = scmp.ne.s32.totalorder %s281, %s282
      %p293 = scmp.eq.s32.totalorder %s37, 0
      %p294 = por %p292, %p293
      %p295 = scmp.ne.s32.totalorder %s281, %s282
      %p296 = scmp.eq.s32.totalorder %s38, 3
      %p297 = por %p295, %p296
      %p299 = scmp.ne.s32.totalorder %s282, %s298
      %p300 = scmp.eq.s32.totalorder %s38, 0
      %p301 = por %p299, %p300
      %s302 = ssub.s32 %s40, %s47
      %p303 = scmp.eq.s32.totalorder %s302, 0
      %s305 = sadd.s32 %s304, 1
      %s306 = scalar_select %p303, %s304, %s305
      %p309 = pneg %p303
      %p310 = scmp.eq.s32.totalorder %s32, 3
      %p311 = por %p309, %p310
      %p312 = scmp.ne.s32.totalorder %s304, %s307
      %p313 = scmp.eq.s32.totalorder %s32, 0
      %p314 = por %p312, %p313
      %p315 = scmp.ne.s32.totalorder %s304, %s307
      %p316 = scmp.eq.s32.totalorder %s37, 3
      %p317 = por %p315, %p316
      %p318 = scmp.ne.s32.totalorder %s307, %s308
      %p319 = scmp.eq.s32.totalorder %s37, 0
      %p320 = por %p318, %p319
      %p321 = scmp.ne.s32.totalorder %s307, %s308
      %p322 = scmp.eq.s32.totalorder %s38, 3
      %p323 = por %p321, %p322
      %p325 = scmp.ne.s32.totalorder %s308, %s324
      %p326 = scmp.eq.s32.totalorder %s38, 0
      %p327 = por %p325, %p326
      %s328 = ssub.s32 %s40, %s47
      %p329 = scmp.eq.s32.totalorder %s328, 0
      %s331 = sadd.s32 %s330, 1
      %s332 = scalar_select %p329, %s330, %s331
      %p335 = pneg %p329
      %p336 = scmp.eq.s32.totalorder %s32, 3
      %p337 = por %p335, %p336
      %p338 = scmp.ne.s32.totalorder %s330, %s333
      %p339 = scmp.eq.s32.totalorder %s32, 0
      %p340 = por %p338, %p339
      %p341 = scmp.ne.s32.totalorder %s330, %s333
      %p342 = scmp.eq.s32.totalorder %s37, 3
      %p343 = por %p341, %p342
      %p344 = scmp.ne.s32.totalorder %s333, %s334
      %p345 = scmp.eq.s32.totalorder %s37, 0
      %p346 = por %p344, %p345
      %p347 = scmp.ne.s32.totalorder %s333, %s334
      %p348 = scmp.eq.s32.totalorder %s38, 3
      %p349 = por %p347, %p348
      %p351 = scmp.ne.s32.totalorder %s334, %s350
      %p352 = scmp.eq.s32.totalorder %s38, 0
      %p353 = por %p351, %p352
      %s354 = ssub.s32 %s40, %s47
      %p355 = scmp.eq.s32.totalorder %s354, 0
      %s357 = sadd.s32 %s356, 1
      %s358 = scalar_select %p355, %s356, %s357
      %p361 = pneg %p355
      %p362 = scmp.eq.s32.totalorder %s32, 3
      %p363 = por %p361, %p362
      %p364 = scmp.ne.s32.totalorder %s356, %s359
      %p365 = scmp.eq.s32.totalorder %s32, 0
      %p366 = por %p364, %p365
      %p367 = scmp.ne.s32.totalorder %s356, %s359
      %p368 = scmp.eq.s32.totalorder %s37, 3
      %p369 = por %p367, %p368
      %p370 = scmp.ne.s32.totalorder %s359, %s360
      %p371 = scmp.eq.s32.totalorder %s37, 0
      %p372 = por %p370, %p371
      %p373 = scmp.ne.s32.totalorder %s359, %s360
      %p374 = scmp.eq.s32.totalorder %s38, 3
      %p375 = por %p373, %p374
      %p377 = scmp.ne.s32.totalorder %s360, %s376
      %p378 = scmp.eq.s32.totalorder %s38, 0
      %p379 = por %p377, %p378
      %s380 = ssub.s32 %s40, %s47
      %p381 = scmp.eq.s32.totalorder %s380, 0
      %s383 = sadd.s32 %s382, 1
      %s384 = scalar_select %p381, %s382, %s383
      %p387 = pneg %p381
      %p388 = scmp.eq.s32.totalorder %s32, 3
      %p389 = por %p387, %p388
      %p390 = scmp.ne.s32.totalorder %s382, %s385
      %p391 = scmp.eq.s32.totalorder %s32, 0
      %p392 = por %p390, %p391
      %p393 = scmp.ne.s32.totalorder %s382, %s385
      %p394 = scmp.eq.s32.totalorder %s37, 3
      %p395 = por %p393, %p394
      %p396 = scmp.ne.s32.totalorder %s385, %s386
      %p397 = scmp.eq.s32.totalorder %s37, 0
      %p398 = por %p396, %p397
      %p399 = scmp.ne.s32.totalorder %s385, %s386
      %p400 = scmp.eq.s32.totalorder %s38, 3
      %p401 = por %p399, %p400
      %p403 = scmp.ne.s32.totalorder %s386, %s402
      %p404 = scmp.eq.s32.totalorder %s38, 0
      %p405 = por %p403, %p404
      %s406 = ssub.s32 %s40, %s47
      %p407 = scmp.eq.s32.totalorder %s406, 0
      %s409 = sadd.s32 %s408, 1
      %s410 = scalar_select %p407, %s408, %s409
      %p413 = pneg %p407
      %p414 = scmp.eq.s32.totalorder %s32, 3
      %p415 = por %p413, %p414
      %p416 = scmp.ne.s32.totalorder %s408, %s411
      %p417 = scmp.eq.s32.totalorder %s32, 0
      %p418 = por %p416, %p417
      %p419 = scmp.ne.s32.totalorder %s408, %s411
      %p420 = scmp.eq.s32.totalorder %s37, 3
      %p421 = por %p419, %p420
      %p422 = scmp.ne.s32.totalorder %s411, %s412
      %p423 = scmp.eq.s32.totalorder %s37, 0
      %p424 = por %p422, %p423
      %p425 = scmp.ne.s32.totalorder %s411, %s412
      %p426 = scmp.eq.s32.totalorder %s38, 3
      %p427 = por %p425, %p426
      %p429 = scmp.ne.s32.totalorder %s412, %s428
      %p430 = scmp.eq.s32.totalorder %s38, 0
      %p431 = por %p429, %p430
      %s432 = ssub.s32 %s40, %s47
      %p433 = scmp.eq.s32.totalorder %s432, 0
      %s435 = sadd.s32 %s434, 1
      %s436 = scalar_select %p433, %s434, %s435
      %p439 = pneg %p433
      %p440 = scmp.eq.s32.totalorder %s32, 3
      %p441 = por %p439, %p440
      %p442 = scmp.ne.s32.totalorder %s434, %s437
      %p443 = scmp.eq.s32.totalorder %s32, 0
      %p444 = por %p442, %p443
      %p445 = scmp.ne.s32.totalorder %s434, %s437
      %p446 = scmp.eq.s32.totalorder %s37, 3
      %p447 = por %p445, %p446
      %p448 = scmp.ne.s32.totalorder %s437, %s438
      %p449 = scmp.eq.s32.totalorder %s37, 0
      %p450 = por %p448, %p449
      %p451 = scmp.ne.s32.totalorder %s437, %s438
      %p452 = scmp.eq.s32.totalorder %s38, 3
      %p453 = por %p451, %p452
      %p455 = scmp.ne.s32.totalorder %s438, %s454
      %p456 = scmp.eq.s32.totalorder %s38, 0
      %p457 = por %p455, %p456
      %s458 = ssub.s32 %s39, %s51
      %p459 = scmp.eq.s32.totalorder %s458, 0
      %s461 = sadd.s32 %s460, 1
      %s462 = scalar_select %p459, %s460, %s461
      %p465 = pneg %p459
      %p466 = scmp.eq.s32.totalorder %s32, 3
      %p467 = por %p465, %p466
      %p468 = scmp.ne.s32.totalorder %s460, %s463
      %p469 = scmp.eq.s32.totalorder %s32, 0
      %p470 = por %p468, %p469
      %p471 = scmp.ne.s32.totalorder %s460, %s463
      %p472 = scmp.eq.s32.totalorder %s37, 3
      %p473 = por %p471, %p472
      %p474 = scmp.ne.s32.totalorder %s463, %s464
      %p475 = scmp.eq.s32.totalorder %s37, 0
      %p476 = por %p474, %p475
      %p477 = scmp.ne.s32.totalorder %s463, %s464
      %p478 = scmp.eq.s32.totalorder %s38, 3
      %p479 = por %p477, %p478
      %p481 = scmp.ne.s32.totalorder %s464, %s480
      %p482 = scmp.eq.s32.totalorder %s38, 0
      %p483 = por %p481, %p482
      %p484 = scmp.le.s32.totalorder 1, %s32
      %p485 = scmp.lt.s32.totalorder %s32, 5
      %p486 = pnand %p484, %p485
      %p487 = pneg %p486
      // Predicated region
      $region9: #{tpu_custom_call.1} parent=5 // pred_check
        _
      $region10: #{tpu_custom_call.1} parent=5 // pred_check_branch
        %489 = sbr.rel (%p486) target = $region12
      $region11: #{tpu_custom_call.1} parent=5 // pred_region
        %s490 = ssub.s32 %s32, 1
        // Predicated region
        $region13: #{tpu_custom_call.1} parent=11 // pred_check
          %p491 = pneg %p117
        $region14: #{tpu_custom_call.1} parent=11 // pred_check_branch
          %493 = sbr.rel (%p491) target = $region16
        $region15: #{tpu_custom_call.1} parent=11 // pred_region
          %495 = vsyncadd [#allocation7], 0
          %s497 = sshll.u32 %s2, 4
          %s498 = int_to_ptr.hbm [resolvable:$true] %s497
          %s499 = sshll.u32 [#allocation8], 4
          %s500 = int_to_ptr.vmem [resolvable:$true] %s499
          %502 = dma.hbm_to_vmem [thread:$0]  %s498, 16, %s500, [#allocation7]
        $region16: #{tpu_custom_call.1} parent=11 // pred_fallthru
          _
        // Predicated region
        $region17: #{tpu_custom_call.1} parent=11 // pred_check
          %p503 = pneg %p138
        $region18: #{tpu_custom_call.1} parent=11 // pred_check_branch
          %505 = sbr.rel (%p503) target = $region20
        $region19: #{tpu_custom_call.1} parent=11 // pred_region
          %507 = vsyncadd [#allocation10], 0
          %s509 = sshll.u32 %s3, 4
          %s510 = int_to_ptr.hbm [resolvable:$true] %s509
          %s511 = sshll.u32 [#allocation9], 4
          %s512 = int_to_ptr.vmem [resolvable:$true] %s511
          %514 = dma.hbm_to_vmem [thread:$0]  %s510, 16, %s512, [#allocation10]
        $region20: #{tpu_custom_call.1} parent=11 // pred_fallthru
          _
      $region12: #{tpu_custom_call.1} parent=5 // pred_fallthru
        _
      %p515 = scmp.lt.s32.totalorder %s32, 4
      // Predicated region
      $region21: #{tpu_custom_call.1} parent=5 // pred_check
        %p516 = pneg %p515
      $region22: #{tpu_custom_call.1} parent=5 // pred_check_branch
        %518 = sbr.rel (%p516) target = $region24
      $region23: #{tpu_custom_call.1} parent=5 // pred_region
        // Predicated region
        $region25: #{tpu_custom_call.1} parent=23 // pred_check
          %p519 = pneg %p64
        $region26: #{tpu_custom_call.1} parent=23 // pred_check_branch
          %521 = sbr.rel (%p519) target = $region28
        $region27: #{tpu_custom_call.1} parent=23 // pred_region
          %s522 = sand.u32 %s32, 1
          %s523 = scalar_lea.sflag [#allocation4], %s522
          %s524 = sand.u32 %s54, 1
          %s525 = smul.addr %s524, 8
          %s526 = scalar_lea.vmem [#allocation3], %s525
          %528 = vsyncadd %s523, 0
          %s529 = smul.addr %s39, 8
          %s530 = scalar_lea.hbm %s0, %s529
          %s532 = sshll.u32 %s530, 4
          %s533 = int_to_ptr.hbm [resolvable:$true] %s532
          %s534 = sshll.u32 %s526, 4
          %s535 = int_to_ptr.vmem [resolvable:$true] %s534
          %537 = dma.hbm_to_vmem [thread:$0]  %s533, 128, %s535, %s523
        $region28: #{tpu_custom_call.1} parent=23 // pred_fallthru
          _
        // Predicated region
        $region29: #{tpu_custom_call.1} parent=23 // pred_check
          %p538 = pneg %p90
        $region30: #{tpu_custom_call.1} parent=23 // pred_check_branch
          %540 = sbr.rel (%p538) target = $region32
        $region31: #{tpu_custom_call.1} parent=23 // pred_region
          %s541 = sand.u32 %s32, 1
          %s542 = scalar_lea.sflag [#allocation7], %s541
          %s543 = sand.u32 %s80, 1
          %s544 = smul.addr %s543, 8
          %s545 = scalar_lea.vmem [#allocation6], %s544
          %547 = vsyncadd %s542, 0
          %s548 = smul.addr %s39, 8
          %s549 = scalar_lea.hbm %s1, %s548
          %s551 = sshll.u32 %s549, 4
          %s552 = int_to_ptr.hbm [resolvable:$true] %s551
          %s553 = sshll.u32 %s545, 4
          %s554 = int_to_ptr.vmem [resolvable:$true] %s553
          %556 = dma.hbm_to_vmem [thread:$0]  %s552, 128, %s554, %s542
        $region32: #{tpu_custom_call.1} parent=23 // pred_fallthru
          _
        // Predicated region
        $region33: #{tpu_custom_call.1} parent=23 // pred_check
          %p557 = pneg %p158
        $region34: #{tpu_custom_call.1} parent=23 // pred_check_branch
          %559 = sbr.rel (%p557) target = $region36
        $region35: #{tpu_custom_call.1} parent=23 // pred_region
          %s560 = sand.u32 %s32, 1
          %s561 = scalar_lea.sflag [#allocation4], %s560
          %s562 = sand.u32 %s148, 1
          %s563 = smul.addr %s562, 192
          %s564 = scalar_lea.vmem [#allocation11], %s563
          %566 = vsyncadd %s561, 0
          %s567 = smul.addr %s40, 48
          %s568 = smul.addr %s567, 4
          %s569 = scalar_lea.hbm %s4, %s568
          %s570 = sshll.u32 %s569, 4
          %s571 = int_to_ptr.hbm [resolvable:$true] %s570
          %s572 = sshll.u32 %s564, 4
          %s573 = int_to_ptr.vmem [resolvable:$true] %s572
          %578 = dma.hbm_to_vmem [thread:$0]  %s571, 3072, %s573, %s561, 192, 192, 12
        $region36: #{tpu_custom_call.1} parent=23 // pred_fallthru
          _
        // Predicated region
        $region37: #{tpu_custom_call.1} parent=23 // pred_check
          %p579 = pneg %p184
        $region38: #{tpu_custom_call.1} parent=23 // pred_check_branch
          %581 = sbr.rel (%p579) target = $region40
        $region39: #{tpu_custom_call.1} parent=23 // pred_region
          %s582 = sand.u32 %s32, 1
          %s583 = scalar_lea.sflag [#allocation7], %s582
          %s584 = sand.u32 %s174, 1
          %s585 = smul.addr %s584, 3
          %s586 = scalar_lea.vmem [#allocation12], %s585
          %588 = vsyncadd %s583, 0
          %s589 = smul.addr %s40, 3
          %s590 = scalar_lea.hbm %s5, %s589
          %s592 = sshll.u32 %s590, 4
          %s593 = int_to_ptr.hbm [resolvable:$true] %s592
          %s594 = sshll.u32 %s586, 4
          %s595 = int_to_ptr.vmem [resolvable:$true] %s594
          %597 = dma.hbm_to_vmem [thread:$0]  %s593, 48, %s595, %s583
        $region40: #{tpu_custom_call.1} parent=23 // pred_fallthru
          _
        // Predicated region
        $region41: #{tpu_custom_call.1} parent=23 // pred_check
          %p598 = pneg %p210
        $region42: #{tpu_custom_call.1} parent=23 // pred_check_branch
          %600 = sbr.rel (%p598) target = $region44
        $region43: #{tpu_custom_call.1} parent=23 // pred_region
          %s601 = sand.u32 %s32, 1
          %s602 = scalar_lea.sflag [#allocation4], %s601
          %s603 = sand.u32 %s200, 1
          %s604 = smul.addr %s603, 64
          %s605 = scalar_lea.vmem [#allocation13], %s604
          %607 = vsyncadd %s602, 0
          %s608 = smul.addr %s40, 16
          %s609 = smul.addr %s608, 4
          %s610 = scalar_lea.hbm %s6, %s609
          %s611 = sshll.u32 %s610, 4
          %s612 = int_to_ptr.hbm [resolvable:$true] %s611
          %s613 = sshll.u32 %s605, 4
          %s614 = int_to_ptr.vmem [resolvable:$true] %s613
          %619 = dma.hbm_to_vmem [thread:$0]  %s612, 1024, %s614, %s602, 64, 64, 4
        $region44: #{tpu_custom_call.1} parent=23 // pred_fallthru
          _
        // Predicated region
        $region45: #{tpu_custom_call.1} parent=23 // pred_check
          %p620 = pneg %p236
        $region46: #{tpu_custom_call.1} parent=23 // pred_check_branch
          %622 = sbr.rel (%p620) target = $region48
        $region47: #{tpu_custom_call.1} parent=23 // pred_region
          %p623 = scmp.lt.s32.totalorder %s40, 1
          %s624 = scalar_select %p623, %s40, 1
          %s625 = scalar_lea.vmem %s7, %s624
        $region48: #{tpu_custom_call.1} parent=23 // pred_fallthru
          _
        // Predicated region
        $region49: #{tpu_custom_call.1} parent=23 // pred_check
          %p626 = pneg %p262
        $region50: #{tpu_custom_call.1} parent=23 // pred_check_branch
          %628 = sbr.rel (%p626) target = $region52
        $region51: #{tpu_custom_call.1} parent=23 // pred_region
          %s629 = sand.u32 %s32, 1
          %s630 = scalar_lea.sflag [#allocation7], %s629
          %s631 = sand.u32 %s252, 1
          %s632 = scalar_lea.vmem [#allocation14], %s631
          %634 = vsyncadd %s630, 0
          %s635 = scalar_lea.hbm %s8, %s40
          %s637 = sshll.u32 %s635, 4
          %s638 = int_to_ptr.hbm [resolvable:$true] %s637
          %s639 = sshll.u32 %s632, 4
          %s640 = int_to_ptr.vmem [resolvable:$true] %s639
          %642 = dma.hbm_to_vmem [thread:$0]  %s638, 16, %s640, %s630
        $region52: #{tpu_custom_call.1} parent=23 // pred_fallthru
          _
        // Predicated region
        $region53: #{tpu_custom_call.1} parent=23 // pred_check
          %p643 = pneg %p288
        $region54: #{tpu_custom_call.1} parent=23 // pred_check_branch
          %645 = sbr.rel (%p643) target = $region56
        $region55: #{tpu_custom_call.1} parent=23 // pred_region
          %s646 = sand.u32 %s32, 1
          %s647 = scalar_lea.sflag [#allocation4], %s646
          %s648 = sand.u32 %s278, 1
          %s649 = scalar_lea.vmem [#allocation15], %s648
          %651 = vsyncadd %s647, 0
          %s652 = scalar_lea.hbm %s9, %s40
          %s654 = sshll.u32 %s652, 4
          %s655 = int_to_ptr.hbm [resolvable:$true] %s654
          %s656 = sshll.u32 %s649, 4
          %s657 = int_to_ptr.vmem [resolvable:$true] %s656
          %659 = dma.hbm_to_vmem [thread:$0]  %s655, 16, %s657, %s647
        $region56: #{tpu_custom_call.1} parent=23 // pred_fallthru
          _
        // Predicated region
        $region57: #{tpu_custom_call.1} parent=23 // pred_check
          %p660 = pneg %p314
        $region58: #{tpu_custom_call.1} parent=23 // pred_check_branch
          %662 = sbr.rel (%p660) target = $region60
        $region59: #{tpu_custom_call.1} parent=23 // pred_region
          %s663 = sand.u32 %s32, 1
          %s664 = scalar_lea.sflag [#allocation7], %s663
          %s665 = sand.u32 %s304, 1
          %s666 = smul.addr %s665, 256
          %s667 = scalar_lea.vmem [#allocation16], %s666
          %669 = vsyncadd %s664, 0
          %s670 = smul.addr %s40, 64
          %s671 = smul.addr %s670, 4
          %s672 = scalar_lea.hbm %s10, %s671
          %s673 = sshll.u32 %s672, 4
          %s674 = int_to_ptr.hbm [resolvable:$true] %s673
          %s675 = sshll.u32 %s667, 4
          %s676 = int_to_ptr.vmem [resolvable:$true] %s675
          %681 = dma.hbm_to_vmem [thread:$0]  %s674, 4096, %s676, %s664, 256, 256, 16
        $region60: #{tpu_custom_call.1} parent=23 // pred_fallthru
          _
        // Predicated region
        $region61: #{tpu_custom_call.1} parent=23 // pred_check
          %p682 = pneg %p340
        $region62: #{tpu_custom_call.1} parent=23 // pred_check_branch
          %684 = sbr.rel (%p682) target = $region64
        $region63: #{tpu_custom_call.1} parent=23 // pred_region
          %p685 = scmp.lt.s32.totalorder %s40, 1
          %s686 = scalar_select %p685, %s40, 1
          %s687 = smul.addr %s686, 4
          %s688 = scalar_lea.vmem %s11, %s687
        $region64: #{tpu_custom_call.1} parent=23 // pred_fallthru
          _
        // Predicated region
        $region65: #{tpu_custom_call.1} parent=23 // pred_check
          %p689 = pneg %p366
        $region66: #{tpu_custom_call.1} parent=23 // pred_check_branch
          %691 = sbr.rel (%p689) target = $region68
        $region67: #{tpu_custom_call.1} parent=23 // pred_region
          %s692 = sand.u32 %s32, 1
          %s693 = scalar_lea.sflag [#allocation4], %s692
          %s694 = sand.u32 %s356, 1
          %s695 = smul.addr %s694, 256
          %s696 = scalar_lea.vmem [#allocation17], %s695
          %698 = vsyncadd %s693, 0
          %s699 = smul.addr %s40, 64
          %s700 = smul.addr %s699, 4
          %s701 = scalar_lea.hbm %s12, %s700
          %s702 = sshll.u32 %s701, 4
          %s703 = int_to_ptr.hbm [resolvable:$true] %s702
          %s704 = sshll.u32 %s696, 4
          %s705 = int_to_ptr.vmem [resolvable:$true] %s704
          %710 = dma.hbm_to_vmem [thread:$0]  %s703, 4096, %s705, %s693, 64, 64, 4
        $region68: #{tpu_custom_call.1} parent=23 // pred_fallthru
          _
        // Predicated region
        $region69: #{tpu_custom_call.1} parent=23 // pred_check
          %p711 = pneg %p392
        $region70: #{tpu_custom_call.1} parent=23 // pred_check_branch
          %713 = sbr.rel (%p711) target = $region72
        $region71: #{tpu_custom_call.1} parent=23 // pred_region
          %p714 = scmp.lt.s32.totalorder %s40, 1
          %s715 = scalar_select %p714, %s40, 1
          %s716 = scalar_lea.vmem %s13, %s715
        $region72: #{tpu_custom_call.1} parent=23 // pred_fallthru
          _
        // Predicated region
        $region73: #{tpu_custom_call.1} parent=23 // pred_check
          %p717 = pneg %p418
        $region74: #{tpu_custom_call.1} parent=23 // pred_check_branch
          %719 = sbr.rel (%p717) target = $region76
        $region75: #{tpu_custom_call.1} parent=23 // pred_region
          %s720 = sand.u32 %s32, 1
          %s721 = scalar_lea.sflag [#allocation7], %s720
          %s722 = sand.u32 %s408, 1
          %s723 = scalar_lea.vmem [#allocation18], %s722
          %725 = vsyncadd %s721, 0
          %s726 = scalar_lea.hbm %s14, %s40
          %s728 = sshll.u32 %s726, 4
          %s729 = int_to_ptr.hbm [resolvable:$true] %s728
          %s730 = sshll.u32 %s723, 4
          %s731 = int_to_ptr.vmem [resolvable:$true] %s730
          %733 = dma.hbm_to_vmem [thread:$0]  %s729, 16, %s731, %s721
        $region76: #{tpu_custom_call.1} parent=23 // pred_fallthru
          _
        // Predicated region
        $region77: #{tpu_custom_call.1} parent=23 // pred_check
          %p734 = pneg %p444
        $region78: #{tpu_custom_call.1} parent=23 // pred_check_branch
          %736 = sbr.rel (%p734) target = $region80
        $region79: #{tpu_custom_call.1} parent=23 // pred_region
          %p737 = scmp.lt.s32.totalorder %s40, 1
          %s738 = scalar_select %p737, %s40, 1
          %s739 = scalar_lea.vmem %s15, %s738
        $region80: #{tpu_custom_call.1} parent=23 // pred_fallthru
          _
      $region24: #{tpu_custom_call.1} parent=5 // pred_fallthru
        _
      %p740 = scmp.le.s32.totalorder 1, %s32
      %p741 = scmp.lt.s32.totalorder %s32, 5
      %p742 = pnand %p740, %p741
      %p743 = pneg %p742
      // Predicated region
      $region81: #{tpu_custom_call.1} parent=5 // pred_check
        _
      $region82: #{tpu_custom_call.1} parent=5 // pred_check_branch
        %745 = sbr.rel (%p742) target = $region84
      $region83: #{tpu_custom_call.1} parent=5 // pred_region
        %s746 = ssub.s32 %s32, 1
        %s747 = sand.u32 %s37, 1
        %s748 = scalar_lea.sflag [#allocation4], %s747
        %s749 = sand.u32 %s57, 1
        %s750 = smul.addr %s749, 8
        %s751 = scalar_lea.vmem [#allocation3], %s750
        // Predicated region
        $region85: #{tpu_custom_call.1} parent=83 // pred_check
          %p752 = pneg %p70
        $region86: #{tpu_custom_call.1} parent=83 // pred_check_branch
          %754 = sbr.rel (%p752) target = $region88
        $region87: #{tpu_custom_call.1} parent=83 // pred_region
          %756 = dma.done %s748, 128
        $region88: #{tpu_custom_call.1} parent=83 // pred_fallthru
          _
        %s757 = sand.u32 %s37, 1
        %s758 = scalar_lea.sflag [#allocation7], %s757
        %s759 = sand.u32 %s83, 1
        %s760 = smul.addr %s759, 8
        %s761 = scalar_lea.vmem [#allocation6], %s760
        // Predicated region
        $region89: #{tpu_custom_call.1} parent=83 // pred_check
          %p762 = pneg %p96
        $region90: #{tpu_custom_call.1} parent=83 // pred_check_branch
          %764 = sbr.rel (%p762) target = $region92
        $region91: #{tpu_custom_call.1} parent=83 // pred_region
          %766 = dma.done %s758, 128
        $region92: #{tpu_custom_call.1} parent=83 // pred_fallthru
          _
        // Predicated region
        $region93: #{tpu_custom_call.1} parent=83 // pred_check
          %p767 = pneg %p117
        $region94: #{tpu_custom_call.1} parent=83 // pred_check_branch
          %769 = sbr.rel (%p767) target = $region96
        $region95: #{tpu_custom_call.1} parent=83 // pred_region
          %771 = dma.done [#allocation7], 16
        $region96: #{tpu_custom_call.1} parent=83 // pred_fallthru
          _
        // Predicated region
        $region97: #{tpu_custom_call.1} parent=83 // pred_check
          %p772 = pneg %p138
        $region98: #{tpu_custom_call.1} parent=83 // pred_check_branch
          %774 = sbr.rel (%p772) target = $region100
        $region99: #{tpu_custom_call.1} parent=83 // pred_region
          %776 = dma.done [#allocation10], 16
        $region100: #{tpu_custom_call.1} parent=83 // pred_fallthru
          _
        %s777 = sand.u32 %s37, 1
        %s778 = scalar_lea.sflag [#allocation4], %s777
        %s779 = sand.u32 %s151, 1
        %s780 = smul.addr %s779, 192
        %s781 = scalar_lea.vmem [#allocation11], %s780
        // Predicated region
        $region101: #{tpu_custom_call.1} parent=83 // pred_check
          %p782 = pneg %p164
        $region102: #{tpu_custom_call.1} parent=83 // pred_check_branch
          %784 = sbr.rel (%p782) target = $region104
        $region103: #{tpu_custom_call.1} parent=83 // pred_region
          %786 = dma.done %s778, 3072
        $region104: #{tpu_custom_call.1} parent=83 // pred_fallthru
          _
        %s787 = sand.u32 %s37, 1
        %s788 = scalar_lea.sflag [#allocation7], %s787
        %s789 = sand.u32 %s177, 1
        %s790 = smul.addr %s789, 3
        %s791 = scalar_lea.vmem [#allocation12], %s790
        // Predicated region
        $region105: #{tpu_custom_call.1} parent=83 // pred_check
          %p792 = pneg %p190
        $region106: #{tpu_custom_call.1} parent=83 // pred_check_branch
          %794 = sbr.rel (%p792) target = $region108
        $region107: #{tpu_custom_call.1} parent=83 // pred_region
          %796 = dma.done %s788, 48
        $region108: #{tpu_custom_call.1} parent=83 // pred_fallthru
          _
        %s797 = sand.u32 %s37, 1
        %s798 = scalar_lea.sflag [#allocation4], %s797
        %s799 = sand.u32 %s203, 1
        %s800 = smul.addr %s799, 64
        %s801 = scalar_lea.vmem [#allocation13], %s800
        // Predicated region
        $region109: #{tpu_custom_call.1} parent=83 // pred_check
          %p802 = pneg %p216
        $region110: #{tpu_custom_call.1} parent=83 // pred_check_branch
          %804 = sbr.rel (%p802) target = $region112
        $region111: #{tpu_custom_call.1} parent=83 // pred_region
          %806 = dma.done %s798, 1024
        $region112: #{tpu_custom_call.1} parent=83 // pred_fallthru
          _
        %s807 = sand.u32 %s37, 1
        %s808 = scalar_lea.sflag [#allocation7], %s807
        %s809 = sand.u32 %s255, 1
        %s810 = scalar_lea.vmem [#allocation14], %s809
        // Predicated region
        $region113: #{tpu_custom_call.1} parent=83 // pred_check
          %p811 = pneg %p268
        $region114: #{tpu_custom_call.1} parent=83 // pred_check_branch
          %813 = sbr.rel (%p811) target = $region116
        $region115: #{tpu_custom_call.1} parent=83 // pred_region
          %815 = dma.done %s808, 16
        $region116: #{tpu_custom_call.1} parent=83 // pred_fallthru
          _
        %s816 = sand.u32 %s37, 1
        %s817 = scalar_lea.sflag [#allocation4], %s816
        %s818 = sand.u32 %s281, 1
        %s819 = scalar_lea.vmem [#allocation15], %s818
        // Predicated region
        $region117: #{tpu_custom_call.1} parent=83 // pred_check
          %p820 = pneg %p294
        $region118: #{tpu_custom_call.1} parent=83 // pred_check_branch
          %822 = sbr.rel (%p820) target = $region120
        $region119: #{tpu_custom_call.1} parent=83 // pred_region
          %824 = dma.done %s817, 16
        $region120: #{tpu_custom_call.1} parent=83 // pred_fallthru
          _
        %s825 = sand.u32 %s37, 1
        %s826 = scalar_lea.sflag [#allocation7], %s825
        %s827 = sand.u32 %s307, 1
        %s828 = smul.addr %s827, 256
        %s829 = scalar_lea.vmem [#allocation16], %s828
        // Predicated region
        $region121: #{tpu_custom_call.1} parent=83 // pred_check
          %p830 = pneg %p320
        $region122: #{tpu_custom_call.1} parent=83 // pred_check_branch
          %832 = sbr.rel (%p830) target = $region124
        $region123: #{tpu_custom_call.1} parent=83 // pred_region
          %834 = dma.done %s826, 4096
        $region124: #{tpu_custom_call.1} parent=83 // pred_fallthru
          _
        %s835 = sand.u32 %s37, 1
        %s836 = scalar_lea.sflag [#allocation4], %s835
        %s837 = sand.u32 %s359, 1
        %s838 = smul.addr %s837, 256
        %s839 = scalar_lea.vmem [#allocation17], %s838
        // Predicated region
        $region125: #{tpu_custom_call.1} parent=83 // pred_check
          %p840 = pneg %p372
        $region126: #{tpu_custom_call.1} parent=83 // pred_check_branch
          %842 = sbr.rel (%p840) target = $region128
        $region127: #{tpu_custom_call.1} parent=83 // pred_region
          %844 = dma.done %s836, 4096
        $region128: #{tpu_custom_call.1} parent=83 // pred_fallthru
          _
        %s845 = sand.u32 %s37, 1
        %s846 = scalar_lea.sflag [#allocation7], %s845
        %s847 = sand.u32 %s411, 1
        %s848 = scalar_lea.vmem [#allocation18], %s847
        // Predicated region
        $region129: #{tpu_custom_call.1} parent=83 // pred_check
          %p849 = pneg %p424
        $region130: #{tpu_custom_call.1} parent=83 // pred_check_branch
          %851 = sbr.rel (%p849) target = $region132
        $region131: #{tpu_custom_call.1} parent=83 // pred_region
          %853 = dma.done %s846, 16
        $region132: #{tpu_custom_call.1} parent=83 // pred_fallthru
          _
        %s854 = sand.u32 %s37, 1
        %s855 = scalar_lea.sflag [#allocation4], %s854
        %s856 = sand.u32 %s57, 1
        %s857 = smul.addr %s856, 8
        %s858 = scalar_lea.vmem [#allocation3], %s857
        %p859 = pneg %p70
        %p860 = pneg %p67
        %s861 = sand.u32 %s37, 1
        %s862 = scalar_lea.sflag [#allocation7], %s861
        %s863 = sand.u32 %s83, 1
        %s864 = smul.addr %s863, 8
        %s865 = scalar_lea.vmem [#allocation6], %s864
        %p866 = pneg %p96
        %p867 = pneg %p93
        %p868 = pneg %p117
        %p869 = pneg %p114
        %p870 = pneg %p138
        %p871 = pneg %p135
        %s872 = sand.u32 %s37, 1
        %s873 = scalar_lea.sflag [#allocation4], %s872
        %s874 = sand.u32 %s151, 1
        %s875 = smul.addr %s874, 192
        %s876 = scalar_lea.vmem [#allocation11], %s875
        %p877 = pneg %p164
        %p878 = pneg %p161
        %s879 = sand.u32 %s37, 1
        %s880 = scalar_lea.sflag [#allocation7], %s879
        %s881 = sand.u32 %s177, 1
        %s882 = smul.addr %s881, 3
        %s883 = scalar_lea.vmem [#allocation12], %s882
        %p884 = pneg %p190
        %p885 = pneg %p187
        %s886 = sand.u32 %s37, 1
        %s887 = scalar_lea.sflag [#allocation4], %s886
        %s888 = sand.u32 %s203, 1
        %s889 = smul.addr %s888, 64
        %s890 = scalar_lea.vmem [#allocation13], %s889
        %p891 = pneg %p216
        %p892 = pneg %p213
        %p893 = scmp.lt.s32.totalorder %s42, 1
        %s894 = scalar_select %p893, %s42, 1
        %s895 = scalar_lea.vmem %s7, %s894
        %p896 = pneg %p242
        %p897 = pneg %p239
        %s898 = sand.u32 %s37, 1
        %s899 = scalar_lea.sflag [#allocation7], %s898
        %s900 = sand.u32 %s255, 1
        %s901 = scalar_lea.vmem [#allocation14], %s900
        %p902 = pneg %p268
        %p903 = pneg %p265
        %s904 = sand.u32 %s37, 1
        %s905 = scalar_lea.sflag [#allocation4], %s904
        %s906 = sand.u32 %s281, 1
        %s907 = scalar_lea.vmem [#allocation15], %s906
        %p908 = pneg %p294
        %p909 = pneg %p291
        %s910 = sand.u32 %s37, 1
        %s911 = scalar_lea.sflag [#allocation7], %s910
        %s912 = sand.u32 %s307, 1
        %s913 = smul.addr %s912, 256
        %s914 = scalar_lea.vmem [#allocation16], %s913
        %p915 = pneg %p320
        %p916 = pneg %p317
        %p917 = scmp.lt.s32.totalorder %s42, 1
        %s918 = scalar_select %p917, %s42, 1
        %s919 = smul.addr %s918, 4
        %s920 = scalar_lea.vmem %s11, %s919
        %p921 = pneg %p346
        %p922 = pneg %p343
        %s923 = sand.u32 %s37, 1
        %s924 = scalar_lea.sflag [#allocation4], %s923
        %s925 = sand.u32 %s359, 1
        %s926 = smul.addr %s925, 256
        %s927 = scalar_lea.vmem [#allocation17], %s926
        %p928 = pneg %p372
        %p929 = pneg %p369
        %p930 = scmp.lt.s32.totalorder %s42, 1
        %s931 = scalar_select %p930, %s42, 1
        %s932 = scalar_lea.vmem %s13, %s931
        %p933 = pneg %p398
        %p934 = pneg %p395
        %s935 = sand.u32 %s37, 1
        %s936 = scalar_lea.sflag [#allocation7], %s935
        %s937 = sand.u32 %s411, 1
        %s938 = scalar_lea.vmem [#allocation18], %s937
        %p939 = pneg %p424
        %p940 = pneg %p421
        %p941 = scmp.lt.s32.totalorder %s42, 1
        %s942 = scalar_select %p941, %s42, 1
        %s943 = scalar_lea.vmem %s15, %s942
        %p944 = pneg %p450
        %p945 = pneg %p447
        %p946 = pneg %p476
        %p947 = pneg %p473
        %s948 = sand.u32 %s463, 1
        %s949 = scalar_lea.sflag [#allocation5], %s948
        %s950 = sand.u32 %s463, 1
        %s951 = smul.addr %s950, 4
        %s952 = scalar_lea.vmem [#allocation19], %s951
        %p953 = scmp.lt.s32.totalorder %s42, 1
        %s954 = scalar_select %p953, %s42, 1
        %s955 = scalar_lea.vmem %s7, %s954
        %p956 = scmp.lt.s32.totalorder %s42, 1
        %s957 = scalar_select %p956, %s42, 1
        %s958 = smul.addr %s957, 4
        %s959 = scalar_lea.vmem %s11, %s958
        %p960 = scmp.lt.s32.totalorder %s42, 1
        %s961 = scalar_select %p960, %s42, 1
        %s962 = scalar_lea.vmem %s13, %s961
        %p963 = scmp.lt.s32.totalorder %s42, 1
        %s964 = scalar_select %p963, %s42, 1
        %s965 = scalar_lea.vmem %s15, %s964
        %p967 = scmp.eq.s32.totalorder %s42, 0
        // Predicated region
        $region133: #{tpu_custom_call.1} parent=83 // pred_check
          %p968 = pneg %p967
        $region134: #{tpu_custom_call.1} parent=83 // pred_check_branch
          %970 = sbr.rel (%p968) target = $region136
        $region135: #{tpu_custom_call.1} parent=83 // pred_region
          %v971 = vld [vmem:[%s751] sm:$0xff]
          %v972 = vld [vmem:[#allocation8] sm:$0x1]
          %v973 = vld [vmem:[#allocation9] sm:$0x1]
          %974 = vadd.xlane.f32.xlu0 %v971
          %v975 = vpop.xlane.xlu0 %974
          %v976 = vrcp.pop 128.0
          %v977 = vmul.f32 128.0, %v976
          %v978 = vsub.f32 1.0, %v977
          %v979 = vmul.f32 %v976, %v978
          %v980 = vadd.f32 %v976, %v979
          %vm981 = vweird.f32 %v976
          %v982 = vsel %vm981, %v976, %v980
          %v983 = vmul.f32 %v975, %v982
          %v984 = vsub.f32 %v971, %v983
          %v985 = vmul.f32 %v984, %v984
          %986 = vadd.xlane.f32.xlu0 %v985
          %v987 = vpop.xlane.xlu0 %986
          %v988 = vmul.f32 %v987, %v982
          %v989 = vadd.f32 %v988, 1e-12
          %v990 = vrsqrt.pop %v989
          %v991 = vmul.f32 %v990, %v989
          %v992 = vmul.f32 %v991, %v990
          %v993 = vmul.f32 0.5, %v992
          %v994 = vsub.f32 1.5, %v993
          %v995 = vmul.f32 %v990, %v994
          %vm996 = vweird.f32 %v989
          %vm997 = vweird.f32 %v990
          %vm998 = vmor %vm996, %vm997
          %v999 = vsel %vm998, %v990, %v995
          %v1000 = vmul.f32 %v984, %v999
          %v1002 = vperm.slane %v972, 0
          %v1004 = vmul.f32 %v1000, %v1002
          %v1006 = vperm.slane %v973, 0
          %v1008 = vadd.f32 %v1004, %v1006
          %1009 = vst [vmem:[#allocation2] sm:$0xff] %v1008
        $region136: #{tpu_custom_call.1} parent=83 // pred_fallthru
          _
        %v1010 = vld [vmem:[#allocation2] sm:$0xff]
        %v1011 = vpack.c.bf16 %v1010, %v1010
        %v1012 = vld [vmem:[%s781] sm:$0xff]
        %v1013 = vld [vmem:[%s781 + $0x8] sm:$0xf]
        %v1014 = vld [vmem:[%s781 + $0xc] sm:$0xff]
        %v1015 = vld [vmem:[%s781 + $0x14] sm:$0xf]
        %v1016 = vld [vmem:[%s781 + $0x18] sm:$0xff]
        %v1017 = vld [vmem:[%s781 + $0x20] sm:$0xf]
        %v1018 = vld [vmem:[%s781 + $0x24] sm:$0xff]
        %v1019 = vld [vmem:[%s781 + $0x2c] sm:$0xf]
        %v1020 = vld [vmem:[%s781 + $0x30] sm:$0xff]
        %v1021 = vld [vmem:[%s781 + $0x38] sm:$0xf]
        %v1022 = vld [vmem:[%s781 + $0x3c] sm:$0xff]
        %v1023 = vld [vmem:[%s781 + $0x44] sm:$0xf]
        %v1024 = vld [vmem:[%s781 + $0x48] sm:$0xff]
        %v1025 = vld [vmem:[%s781 + $0x50] sm:$0xf]
        %v1026 = vld [vmem:[%s781 + $0x54] sm:$0xff]
        %v1027 = vld [vmem:[%s781 + $0x5c] sm:$0xf]
        %v1028 = vld [vmem:[%s781 + $0x60] sm:$0xff]
        %v1029 = vld [vmem:[%s781 + $0x68] sm:$0xf]
        %v1030 = vld [vmem:[%s781 + $0x6c] sm:$0xff]
        %v1031 = vld [vmem:[%s781 + $0x74] sm:$0xf]
        %v1032 = vld [vmem:[%s781 + $0x78] sm:$0xff]
        %v1033 = vld [vmem:[%s781 + $0x80] sm:$0xf]
        %v1034 = vld [vmem:[%s781 + $0x84] sm:$0xff]
        %v1035 = vld [vmem:[%s781 + $0x8c] sm:$0xf]
        %v1036 = vld [vmem:[%s781 + $0x90] sm:$0xff]
        %v1037 = vld [vmem:[%s781 + $0x98] sm:$0xf]
        %v1038 = vld [vmem:[%s781 + $0x9c] sm:$0xff]
        %v1039 = vld [vmem:[%s781 + $0xa4] sm:$0xf]
        %v1040 = vld [vmem:[%s781 + $0xa8] sm:$0xff]
        %v1041 = vld [vmem:[%s781 + $0xb0] sm:$0xf]
        %v1042 = vld [vmem:[%s781 + $0xb4] sm:$0xff]
        %v1043 = vld [vmem:[%s781 + $0xbc] sm:$0xf]
        %v1044 = vld [vmem:[%s791] sm:$0x7]
        %v1046 = vperm.slane %v1044, 0
        %v1047 = vperm.slane %v1044, 1
        %v1048 = vperm.slane %v1044, 2
        %v1084 = vunpack.c.l.b16 %v1012
        %v1085 = vunpack.c.h.b16 %v1012
        %v1086 = vunpack.c.l.b16 %v1013
        %v1087 = vunpack.c.l.b16 %v1014
        %v1088 = vunpack.c.h.b16 %v1014
        %v1089 = vunpack.c.l.b16 %v1015
        %v1090 = vunpack.c.l.b16 %v1016
        %v1091 = vunpack.c.h.b16 %v1016
        %v1092 = vunpack.c.l.b16 %v1017
        %v1093 = vunpack.c.l.b16 %v1018
        %v1094 = vunpack.c.h.b16 %v1018
        %v1095 = vunpack.c.l.b16 %v1019
        %v1096 = vunpack.c.l.b16 %v1020
        %v1097 = vunpack.c.h.b16 %v1020
        %v1098 = vunpack.c.l.b16 %v1021
        %v1099 = vunpack.c.l.b16 %v1022
        %v1100 = vunpack.c.h.b16 %v1022
        %v1101 = vunpack.c.l.b16 %v1023
        %v1102 = vunpack.c.l.b16 %v1024
        %v1103 = vunpack.c.h.b16 %v1024
        %v1104 = vunpack.c.l.b16 %v1025
        %v1105 = vunpack.c.l.b16 %v1026
        %v1106 = vunpack.c.h.b16 %v1026
        %v1107 = vunpack.c.l.b16 %v1027
        %v1108 = vunpack.c.l.b16 %v1028
        %v1109 = vunpack.c.h.b16 %v1028
        %v1110 = vunpack.c.l.b16 %v1029
        %v1111 = vunpack.c.l.b16 %v1030
        %v1112 = vunpack.c.h.b16 %v1030
        %v1113 = vunpack.c.l.b16 %v1031
        %v1114 = vunpack.c.l.b16 %v1032
        %v1115 = vunpack.c.h.b16 %v1032
        %v1116 = vunpack.c.l.b16 %v1033
        %v1117 = vunpack.c.l.b16 %v1034
        %v1118 = vunpack.c.h.b16 %v1034
        %v1119 = vunpack.c.l.b16 %v1035
        %v1120 = vunpack.c.l.b16 %v1036
        %v1121 = vunpack.c.h.b16 %v1036
        %v1122 = vunpack.c.l.b16 %v1037
        %v1123 = vunpack.c.l.b16 %v1038
        %v1124 = vunpack.c.h.b16 %v1038
        %v1125 = vunpack.c.l.b16 %v1039
        %v1126 = vunpack.c.l.b16 %v1040
        %v1127 = vunpack.c.h.b16 %v1040
        %v1128 = vunpack.c.l.b16 %v1041
        %v1129 = vunpack.c.l.b16 %v1042
        %v1130 = vunpack.c.h.b16 %v1042
        %v1131 = vunpack.c.l.b16 %v1043
        %v1132 = vpack.c.b16 %v1087, %v1084
        %v1133 = vpack.c.b16 %v1088, %v1085
        %v1134 = vpack.c.b16 %v1089, %v1086
        %v1135 = vpack.c.b16 %v1093, %v1090
        %v1136 = vpack.c.b16 %v1094, %v1091
        %v1137 = vpack.c.b16 %v1095, %v1092
        %v1138 = vpack.c.b16 %v1099, %v1096
        %v1139 = vpack.c.b16 %v1100, %v1097
        %v1140 = vpack.c.b16 %v1101, %v1098
        %v1141 = vpack.c.b16 %v1105, %v1102
        %v1142 = vpack.c.b16 %v1106, %v1103
        %v1143 = vpack.c.b16 %v1107, %v1104
        %v1144 = vpack.c.b16 %v1111, %v1108
        %v1145 = vpack.c.b16 %v1112, %v1109
        %v1146 = vpack.c.b16 %v1113, %v1110
        %v1147 = vpack.c.b16 %v1117, %v1114
        %v1148 = vpack.c.b16 %v1118, %v1115
        %v1149 = vpack.c.b16 %v1119, %v1116
        %v1150 = vpack.c.b16 %v1123, %v1120
        %v1151 = vpack.c.b16 %v1124, %v1121
        %v1152 = vpack.c.b16 %v1125, %v1122
        %v1153 = vpack.c.b16 %v1129, %v1126
        %v1154 = vpack.c.b16 %v1130, %v1127
        %v1155 = vpack.c.b16 %v1131, %v1128
        %1180 = vmatpush.bf16.msra.mxu0 %v1153
        %1181 = vmatpush.bf16.msra.mxu0 %v1150
        %1182 = vmatpush.bf16.msra.mxu0 %v1147
        %1183 = vmatpush.bf16.msra.mxu0 %v1144
        %1184 = vmatpush.bf16.msra.mxu0 %v1141
        %1185 = vmatpush.bf16.msra.mxu0 %v1138
        %1186 = vmatpush.bf16.msra.mxu0 %v1135
        %1187 = vmatpush.bf16.msra.mxu0 %v1132
        %1188 = vmatmul.bf16.gmra.mxu0 %v1011
        %v1189 = vpop.f32.mrf.mxu0
        %v1190 = vadd.f32 %v1046, %v1189
        %v1191 = vpop.f32.mrf.mxu0
        %1192 = vdwg.mxu0
        %1193 = vmatpush.bf16.msra.mxu0 %v1154
        %1194 = vmatpush.bf16.msra.mxu0 %v1151
        %1195 = vmatpush.bf16.msra.mxu0 %v1148
        %1196 = vmatpush.bf16.msra.mxu0 %v1145
        %1197 = vmatpush.bf16.msra.mxu0 %v1142
        %1198 = vmatpush.bf16.msra.mxu0 %v1139
        %1199 = vmatpush.bf16.msra.mxu0 %v1136
        %1200 = vmatpush.bf16.msra.mxu0 %v1133
        %1201 = vmatmul.bf16.gmra.mxu0 %v1011
        %v1202 = vpop.f32.mrf.mxu0
        %v1203 = vadd.f32 %v1047, %v1202
        %v1204 = vpop.f32.mrf.mxu0
        %1205 = vdwg.mxu0
        %1206 = vmatpush.bf16.msra.mxu0 %v1155
        %1207 = vmatpush.bf16.msra.mxu0 %v1152
        %1208 = vmatpush.bf16.msra.mxu0 %v1149
        %1209 = vmatpush.bf16.msra.mxu0 %v1146
        %1210 = vmatpush.bf16.msra.mxu0 %v1143
        %1211 = vmatpush.bf16.msra.mxu0 %v1140
        %1212 = vmatpush.bf16.msra.mxu0 %v1137
        %1213 = vmatpush.bf16.msra.mxu0 %v1134
        %1214 = vmatmul.bf16.gmra.mxu0 %v1011
        %v1215 = vpop.f32.mrf.mxu0
        %v1216 = vadd.f32 %v1048, %v1215
        %v1217 = vpop.f32.mrf.mxu0
        %1218 = vdwg.mxu0
        %v1219 = vpack.c.bf16 %v1203, %v1190
        %v1220 = vpack.c.bf16 %v1216, %v1216
        %1222 = vrot.lane.b32.xlu0 %v1219, 64
        %v1223 = vpop.permute.xlu0 %1222
        %v1224 = vrot.slane %v1219, 4
        %v1225 = vrot.slane %v1223, 4
        %1227 = vrot.lane.b32.xlu0 %v1220, 64
        %v1228 = vpop.permute.xlu0 %1227
        %vm1229 = vcmask 523264
        %v1231 = vsel %vm1229, %v1219, 0
        %v1234 = vsel %vm1229, %v1224, 0
        %1236 = vmatpush.bf16.xpose.msra.mxu0 0
        %1237 = vmatpush.bf16.xpose.msra.mxu0 0
        %1238 = vmatpush.bf16.xpose.msra.mxu0 0
        %1239 = vmatpush.bf16.xpose.msra.mxu0 0
        %1240 = vmatpush.bf16.xpose.msra.mxu0 0
        %1241 = vmatpush.bf16.xpose.msra.mxu0 0
        %1242 = vmatpush.bf16.xpose.msra.mxu0 0
        %1243 = vmatpush.bf16.xpose.msra.mxu0 %v1234
        %1244 = vmatmul.bf16.gmra.mxu0 %v1231
        %v1245 = vpop.f32.mrf.mxu0
        %v1246 = vadd.f32 0.0, %v1245
        %v1247 = vpop.f32.mrf.mxu0
        %1248 = vdwg.mxu0
        %v1250 = vsel %vm1229, %v1223, 0
        %v1253 = vsel %vm1229, %v1225, 0
        %1255 = vmatpush.bf16.xpose.msra.mxu0 0
        %1256 = vmatpush.bf16.xpose.msra.mxu0 0
        %1257 = vmatpush.bf16.xpose.msra.mxu0 0
        %1258 = vmatpush.bf16.xpose.msra.mxu0 0
        %1259 = vmatpush.bf16.xpose.msra.mxu0 0
        %1260 = vmatpush.bf16.xpose.msra.mxu0 0
        %1261 = vmatpush.bf16.xpose.msra.mxu0 0
        %1262 = vmatpush.bf16.xpose.msra.mxu0 %v1253
        %1263 = vmatmul.bf16.gmra.mxu0 %v1250
        %v1264 = vpop.f32.mrf.mxu0
        %v1265 = vadd.f32 0.0, %v1264
        %v1266 = vpop.f32.mrf.mxu0
        %1267 = vdwg.mxu0
        %v1268 = vld [vmem:[%s761] sm:$0xff]
        %v1269 = vadd.f32 %v1246, %v1268
        %v1270 = vadd.f32 %v1265, %v1268
        %vm1271 = vcmask 64512
        %v1272 = vsel %vm1271, %v1269, -inf
        %1273 = vmax.xlane.f32.xlu0 %v1272
        %v1274 = vpop.xlane.xlu0 %1273
        %v1275 = vsel %vm1271, %v1270, -inf
        %1276 = vmax.xlane.f32.xlu0 %v1275
        %v1277 = vpop.xlane.xlu0 %1276
        %v1278 = vsub.f32 %v1269, %v1274
        %v1279 = vsub.f32 %v1270, %v1277
        %v1280 = vmul.f32 %v1278, 1.442695
        %v1281 = vpow.pop %v1280
        %v1282 = vmul.f32 %v1279, 1.442695
        %v1283 = vpow.pop %v1282
        %v1284 = vsel %vm1271, %v1281, 0.0
        %1285 = vadd.xlane.f32.xlu0 %v1284
        %v1286 = vpop.xlane.xlu0 %1285
        %v1287 = vsel %vm1271, %v1283, 0.0
        %1288 = vadd.xlane.f32.xlu0 %v1287
        %v1289 = vpop.xlane.xlu0 %1288
        %v1290 = vrcp.pop %v1286
        %v1291 = vrcp.pop %v1289
        %v1292 = vmul.f32 %v1281, %v1290
        %v1293 = vmul.f32 %v1283, %v1291
        %v1294 = vpack.c.bf16 %v1292, %v1292
        %v1295 = vpack.c.bf16 %v1293, %v1293
        %v1297 = vsel %vm1271, %v1294, 0
        %vm1299 = vcmask 1043456
        %v1301 = vsel %vm1299, %v1220, 0
        %1303 = vmatpush.bf16.msra.mxu0 0
        %1304 = vmatpush.bf16.msra.mxu0 0
        %1305 = vmatpush.bf16.msra.mxu0 0
        %1306 = vmatpush.bf16.msra.mxu0 0
        %1307 = vmatpush.bf16.msra.mxu0 0
        %1308 = vmatpush.bf16.msra.mxu0 0
        %1309 = vmatpush.bf16.msra.mxu0 0
        %1310 = vmatpush.bf16.msra.mxu0 %v1301
        %1311 = vmatmul.bf16.gmra.mxu0 %v1297
        %v1312 = vpop.f32.mrf.mxu0
        %v1313 = vadd.f32 0.0, %v1312
        %v1314 = vpop.f32.mrf.mxu0
        %1315 = vdwg.mxu0
        %v1317 = vsel %vm1271, %v1295, 0
        %v1320 = vsel %vm1299, %v1228, 0
        %1322 = vmatpush.bf16.msra.mxu0 0
        %1323 = vmatpush.bf16.msra.mxu0 0
        %1324 = vmatpush.bf16.msra.mxu0 0
        %1325 = vmatpush.bf16.msra.mxu0 0
        %1326 = vmatpush.bf16.msra.mxu0 0
        %1327 = vmatpush.bf16.msra.mxu0 0
        %1328 = vmatpush.bf16.msra.mxu0 0
        %1329 = vmatpush.bf16.msra.mxu0 %v1320
        %1330 = vmatmul.bf16.gmra.mxu0 %v1317
        %v1331 = vpop.f32.mrf.mxu0
        %v1332 = vadd.f32 0.0, %v1331
        %v1333 = vpop.f32.mrf.mxu0
        %1334 = vdwg.mxu0
        %1336 = vrot.lane.b32.xlu0 %v1332, 64
        %v1337 = vpop.permute.xlu0 %1336
        %v1339 = vsel %vm1229, %v1313, %v1337
        %v1340 = vpack.c.bf16 %v1339, %v1339
        %v1341 = vld [vmem:[%s801] sm:$0xf]
        %v1342 = vld [vmem:[%s801 + $0x4] sm:$0xf]
        %v1343 = vld [vmem:[%s801 + $0x8] sm:$0xf]
        %v1344 = vld [vmem:[%s801 + $0xc] sm:$0xf]
        %v1345 = vld [vmem:[%s801 + $0x10] sm:$0xf]
        %v1346 = vld [vmem:[%s801 + $0x14] sm:$0xf]
        %v1347 = vld [vmem:[%s801 + $0x18] sm:$0xf]
        %v1348 = vld [vmem:[%s801 + $0x1c] sm:$0xf]
        %v1349 = vld [vmem:[%s801 + $0x20] sm:$0xf]
        %v1350 = vld [vmem:[%s801 + $0x24] sm:$0xf]
        %v1351 = vld [vmem:[%s801 + $0x28] sm:$0xf]
        %v1352 = vld [vmem:[%s801 + $0x2c] sm:$0xf]
        %v1353 = vld [vmem:[%s801 + $0x30] sm:$0xf]
        %v1354 = vld [vmem:[%s801 + $0x34] sm:$0xf]
        %v1355 = vld [vmem:[%s801 + $0x38] sm:$0xf]
        %v1356 = vld [vmem:[%s801 + $0x3c] sm:$0xf]
        %v1357 = vld [vmem:[%s955] sm:$0x1]
        %v1359 = vperm.slane %v1357, 0
        %v1377 = vunpack.c.l.b16 %v1341
        %v1378 = vunpack.c.l.b16 %v1342
        %v1379 = vunpack.c.l.b16 %v1343
        %v1380 = vunpack.c.l.b16 %v1344
        %v1381 = vunpack.c.l.b16 %v1345
        %v1382 = vunpack.c.l.b16 %v1346
        %v1383 = vunpack.c.l.b16 %v1347
        %v1384 = vunpack.c.l.b16 %v1348
        %v1385 = vunpack.c.l.b16 %v1349
        %v1386 = vunpack.c.l.b16 %v1350
        %v1387 = vunpack.c.l.b16 %v1351
        %v1388 = vunpack.c.l.b16 %v1352
        %v1389 = vunpack.c.l.b16 %v1353
        %v1390 = vunpack.c.l.b16 %v1354
        %v1391 = vunpack.c.l.b16 %v1355
        %v1392 = vunpack.c.l.b16 %v1356
        %v1393 = vpack.c.b16 %v1378, %v1377
        %v1394 = vpack.c.b16 %v1380, %v1379
        %v1395 = vpack.c.b16 %v1382, %v1381
        %v1396 = vpack.c.b16 %v1384, %v1383
        %v1397 = vpack.c.b16 %v1386, %v1385
        %v1398 = vpack.c.b16 %v1388, %v1387
        %v1399 = vpack.c.b16 %v1390, %v1389
        %v1400 = vpack.c.b16 %v1392, %v1391
        %1409 = vmatpush.bf16.msra.mxu0 %v1400
        %1410 = vmatpush.bf16.msra.mxu0 %v1399
        %1411 = vmatpush.bf16.msra.mxu0 %v1398
        %1412 = vmatpush.bf16.msra.mxu0 %v1397
        %1413 = vmatpush.bf16.msra.mxu0 %v1396
        %1414 = vmatpush.bf16.msra.mxu0 %v1395
        %1415 = vmatpush.bf16.msra.mxu0 %v1394
        %1416 = vmatpush.bf16.msra.mxu0 %v1393
        %1417 = vmatmul.bf16.gmra.mxu0 %v1340
        %v1418 = vpop.f32.mrf.mxu0
        %v1419 = vadd.f32 %v1359, %v1418
        %v1420 = vpop.f32.mrf.mxu0
        %1421 = vdwg.mxu0
        %v1422 = vadd.f32 %v1010, %v1419
        %v1423 = vld [vmem:[%s810] sm:$0x1]
        %v1424 = vld [vmem:[%s819] sm:$0x1]
        %1425 = vadd.xlane.f32.xlu0 %v1422
        %v1426 = vpop.xlane.xlu0 %1425
        %v1427 = vrcp.pop 128.0
        %v1428 = vmul.f32 128.0, %v1427
        %v1429 = vsub.f32 1.0, %v1428
        %v1430 = vmul.f32 %v1427, %v1429
        %v1431 = vadd.f32 %v1427, %v1430
        %vm1432 = vweird.f32 %v1427
        %v1433 = vsel %vm1432, %v1427, %v1431
        %v1434 = vmul.f32 %v1426, %v1433
        %v1435 = vsub.f32 %v1422, %v1434
        %v1436 = vmul.f32 %v1435, %v1435
        %1437 = vadd.xlane.f32.xlu0 %v1436
        %v1438 = vpop.xlane.xlu0 %1437
        %v1439 = vmul.f32 %v1438, %v1433
        %v1440 = vadd.f32 %v1439, 1e-12
        %v1441 = vrsqrt.pop %v1440
        %v1442 = vmul.f32 %v1441, %v1440
        %v1443 = vmul.f32 %v1442, %v1441
        %v1444 = vmul.f32 0.5, %v1443
        %v1445 = vsub.f32 1.5, %v1444
        %v1446 = vmul.f32 %v1441, %v1445
        %vm1447 = vweird.f32 %v1440
        %vm1448 = vweird.f32 %v1441
        %vm1449 = vmor %vm1447, %vm1448
        %v1450 = vsel %vm1449, %v1441, %v1446
        %v1451 = vmul.f32 %v1435, %v1450
        %v1453 = vperm.slane %v1423, 0
        %v1455 = vmul.f32 %v1451, %v1453
        %v1457 = vperm.slane %v1424, 0
        %v1459 = vadd.f32 %v1455, %v1457
        %v1460 = vpack.c.bf16 %v1459, %v1459
        %v1461 = vld [vmem:[%s829] sm:$0xff]
        %v1462 = vld [vmem:[%s829 + $0x8] sm:$0xff]
        %v1463 = vld [vmem:[%s829 + $0x10] sm:$0xff]
        %v1464 = vld [vmem:[%s829 + $0x18] sm:$0xff]
        %v1465 = vld [vmem:[%s829 + $0x20] sm:$0xff]
        %v1466 = vld [vmem:[%s829 + $0x28] sm:$0xff]
        %v1467 = vld [vmem:[%s829 + $0x30] sm:$0xff]
        %v1468 = vld [vmem:[%s829 + $0x38] sm:$0xff]
        %v1469 = vld [vmem:[%s829 + $0x40] sm:$0xff]
        %v1470 = vld [vmem:[%s829 + $0x48] sm:$0xff]
        %v1471 = vld [vmem:[%s829 + $0x50] sm:$0xff]
        %v1472 = vld [vmem:[%s829 + $0x58] sm:$0xff]
        %v1473 = vld [vmem:[%s829 + $0x60] sm:$0xff]
        %v1474 = vld [vmem:[%s829 + $0x68] sm:$0xff]
        %v1475 = vld [vmem:[%s829 + $0x70] sm:$0xff]
        %v1476 = vld [vmem:[%s829 + $0x78] sm:$0xff]
        %v1477 = vld [vmem:[%s829 + $0x80] sm:$0xff]
        %v1478 = vld [vmem:[%s829 + $0x88] sm:$0xff]
        %v1479 = vld [vmem:[%s829 + $0x90] sm:$0xff]
        %v1480 = vld [vmem:[%s829 + $0x98] sm:$0xff]
        %v1481 = vld [vmem:[%s829 + $0xa0] sm:$0xff]
        %v1482 = vld [vmem:[%s829 + $0xa8] sm:$0xff]
        %v1483 = vld [vmem:[%s829 + $0xb0] sm:$0xff]
        %v1484 = vld [vmem:[%s829 + $0xb8] sm:$0xff]
        %v1485 = vld [vmem:[%s829 + $0xc0] sm:$0xff]
        %v1486 = vld [vmem:[%s829 + $0xc8] sm:$0xff]
        %v1487 = vld [vmem:[%s829 + $0xd0] sm:$0xff]
        %v1488 = vld [vmem:[%s829 + $0xd8] sm:$0xff]
        %v1489 = vld [vmem:[%s829 + $0xe0] sm:$0xff]
        %v1490 = vld [vmem:[%s829 + $0xe8] sm:$0xff]
        %v1491 = vld [vmem:[%s829 + $0xf0] sm:$0xff]
        %v1492 = vld [vmem:[%s829 + $0xf8] sm:$0xff]
        %v1493 = vld [vmem:[%s959] sm:$0xf]
        %v1495 = vperm.slane %v1493, 0
        %v1496 = vperm.slane %v1493, 1
        %v1497 = vperm.slane %v1493, 2
        %v1498 = vperm.slane %v1493, 3
        %v1535 = vunpack.c.l.b16 %v1461
        %v1536 = vunpack.c.h.b16 %v1461
        %v1537 = vunpack.c.l.b16 %v1462
        %v1538 = vunpack.c.h.b16 %v1462
        %v1539 = vunpack.c.l.b16 %v1463
        %v1540 = vunpack.c.h.b16 %v1463
        %v1541 = vunpack.c.l.b16 %v1464
        %v1542 = vunpack.c.h.b16 %v1464
        %v1543 = vunpack.c.l.b16 %v1465
        %v1544 = vunpack.c.h.b16 %v1465
        %v1545 = vunpack.c.l.b16 %v1466
        %v1546 = vunpack.c.h.b16 %v1466
        %v1547 = vunpack.c.l.b16 %v1467
        %v1548 = vunpack.c.h.b16 %v1467
        %v1549 = vunpack.c.l.b16 %v1468
        %v1550 = vunpack.c.h.b16 %v1468
        %v1551 = vunpack.c.l.b16 %v1469
        %v1552 = vunpack.c.h.b16 %v1469
        %v1553 = vunpack.c.l.b16 %v1470
        %v1554 = vunpack.c.h.b16 %v1470
        %v1555 = vunpack.c.l.b16 %v1471
        %v1556 = vunpack.c.h.b16 %v1471
        %v1557 = vunpack.c.l.b16 %v1472
        %v1558 = vunpack.c.h.b16 %v1472
        %v1559 = vunpack.c.l.b16 %v1473
        %v1560 = vunpack.c.h.b16 %v1473
        %v1561 = vunpack.c.l.b16 %v1474
        %v1562 = vunpack.c.h.b16 %v1474
        %v1563 = vunpack.c.l.b16 %v1475
        %v1564 = vunpack.c.h.b16 %v1475
        %v1565 = vunpack.c.l.b16 %v1476
        %v1566 = vunpack.c.h.b16 %v1476
        %v1567 = vunpack.c.l.b16 %v1477
        %v1568 = vunpack.c.h.b16 %v1477
        %v1569 = vunpack.c.l.b16 %v1478
        %v1570 = vunpack.c.h.b16 %v1478
        %v1571 = vunpack.c.l.b16 %v1479
        %v1572 = vunpack.c.h.b16 %v1479
        %v1573 = vunpack.c.l.b16 %v1480
        %v1574 = vunpack.c.h.b16 %v1480
        %v1575 = vunpack.c.l.b16 %v1481
        %v1576 = vunpack.c.h.b16 %v1481
        %v1577 = vunpack.c.l.b16 %v1482
        %v1578 = vunpack.c.h.b16 %v1482
        %v1579 = vunpack.c.l.b16 %v1483
        %v1580 = vunpack.c.h.b16 %v1483
        %v1581 = vunpack.c.l.b16 %v1484
        %v1582 = vunpack.c.h.b16 %v1484
        %v1583 = vunpack.c.l.b16 %v1485
        %v1584 = vunpack.c.h.b16 %v1485
        %v1585 = vunpack.c.l.b16 %v1486
        %v1586 = vunpack.c.h.b16 %v1486
        %v1587 = vunpack.c.l.b16 %v1487
        %v1588 = vunpack.c.h.b16 %v1487
        %v1589 = vunpack.c.l.b16 %v1488
        %v1590 = vunpack.c.h.b16 %v1488
        %v1591 = vunpack.c.l.b16 %v1489
        %v1592 = vunpack.c.h.b16 %v1489
        %v1593 = vunpack.c.l.b16 %v1490
        %v1594 = vunpack.c.h.b16 %v1490
        %v1595 = vunpack.c.l.b16 %v1491
        %v1596 = vunpack.c.h.b16 %v1491
        %v1597 = vunpack.c.l.b16 %v1492
        %v1598 = vunpack.c.h.b16 %v1492
        %v1599 = vpack.c.b16 %v1539, %v1535
        %v1600 = vpack.c.b16 %v1540, %v1536
        %v1601 = vpack.c.b16 %v1541, %v1537
        %v1602 = vpack.c.b16 %v1542, %v1538
        %v1603 = vpack.c.b16 %v1547, %v1543
        %v1604 = vpack.c.b16 %v1548, %v1544
        %v1605 = vpack.c.b16 %v1549, %v1545
        %v1606 = vpack.c.b16 %v1550, %v1546
        %v1607 = vpack.c.b16 %v1555, %v1551
        %v1608 = vpack.c.b16 %v1556, %v1552
        %v1609 = vpack.c.b16 %v1557, %v1553
        %v1610 = vpack.c.b16 %v1558, %v1554
        %v1611 = vpack.c.b16 %v1563, %v1559
        %v1612 = vpack.c.b16 %v1564, %v1560
        %v1613 = vpack.c.b16 %v1565, %v1561
        %v1614 = vpack.c.b16 %v1566, %v1562
        %v1615 = vpack.c.b16 %v1571, %v1567
        %v1616 = vpack.c.b16 %v1572, %v1568
        %v1617 = vpack.c.b16 %v1573, %v1569
        %v1618 = vpack.c.b16 %v1574, %v1570
        %v1619 = vpack.c.b16 %v1579, %v1575
        %v1620 = vpack.c.b16 %v1580, %v1576
        %v1621 = vpack.c.b16 %v1581, %v1577
        %v1622 = vpack.c.b16 %v1582, %v1578
        %v1623 = vpack.c.b16 %v1587, %v1583
        %v1624 = vpack.c.b16 %v1588, %v1584
        %v1625 = vpack.c.b16 %v1589, %v1585
        %v1626 = vpack.c.b16 %v1590, %v1586
        %v1627 = vpack.c.b16 %v1595, %v1591
        %v1628 = vpack.c.b16 %v1596, %v1592
        %v1629 = vpack.c.b16 %v1597, %v1593
        %v1630 = vpack.c.b16 %v1598, %v1594
        %1663 = vmatpush.bf16.msra.mxu0 %v1627
        %1664 = vmatpush.bf16.msra.mxu0 %v1623
        %1665 = vmatpush.bf16.msra.mxu0 %v1619
        %1666 = vmatpush.bf16.msra.mxu0 %v1615
        %1667 = vmatpush.bf16.msra.mxu0 %v1611
        %1668 = vmatpush.bf16.msra.mxu0 %v1607
        %1669 = vmatpush.bf16.msra.mxu0 %v1603
        %1670 = vmatpush.bf16.msra.mxu0 %v1599
        %1671 = vmatmul.bf16.gmra.mxu0 %v1460
        %v1672 = vpop.f32.mrf.mxu0
        %v1673 = vadd.f32 %v1495, %v1672
        %v1674 = vpop.f32.mrf.mxu0
        %1675 = vdwg.mxu0
        %1676 = vmatpush.bf16.msra.mxu0 %v1628
        %1677 = vmatpush.bf16.msra.mxu0 %v1624
        %1678 = vmatpush.bf16.msra.mxu0 %v1620
        %1679 = vmatpush.bf16.msra.mxu0 %v1616
        %1680 = vmatpush.bf16.msra.mxu0 %v1612
        %1681 = vmatpush.bf16.msra.mxu0 %v1608
        %1682 = vmatpush.bf16.msra.mxu0 %v1604
        %1683 = vmatpush.bf16.msra.mxu0 %v1600
        %1684 = vmatmul.bf16.gmra.mxu0 %v1460
        %v1685 = vpop.f32.mrf.mxu0
        %v1686 = vadd.f32 %v1496, %v1685
        %v1687 = vpop.f32.mrf.mxu0
        %1688 = vdwg.mxu0
        %1689 = vmatpush.bf16.msra.mxu0 %v1629
        %1690 = vmatpush.bf16.msra.mxu0 %v1625
        %1691 = vmatpush.bf16.msra.mxu0 %v1621
        %1692 = vmatpush.bf16.msra.mxu0 %v1617
        %1693 = vmatpush.bf16.msra.mxu0 %v1613
        %1694 = vmatpush.bf16.msra.mxu0 %v1609
        %1695 = vmatpush.bf16.msra.mxu0 %v1605
        %1696 = vmatpush.bf16.msra.mxu0 %v1601
        %1697 = vmatmul.bf16.gmra.mxu0 %v1460
        %v1698 = vpop.f32.mrf.mxu0
        %v1699 = vadd.f32 %v1497, %v1698
        %v1700 = vpop.f32.mrf.mxu0
        %1701 = vdwg.mxu0
        %1702 = vmatpush.bf16.msra.mxu0 %v1630
        %1703 = vmatpush.bf16.msra.mxu0 %v1626
        %1704 = vmatpush.bf16.msra.mxu0 %v1622
        %1705 = vmatpush.bf16.msra.mxu0 %v1618
        %1706 = vmatpush.bf16.msra.mxu0 %v1614
        %1707 = vmatpush.bf16.msra.mxu0 %v1610
        %1708 = vmatpush.bf16.msra.mxu0 %v1606
        %1709 = vmatpush.bf16.msra.mxu0 %v1602
        %1710 = vmatmul.bf16.gmra.mxu0 %v1460
        %v1711 = vpop.f32.mrf.mxu0
        %v1712 = vadd.f32 %v1498, %v1711
        %v1713 = vpop.f32.mrf.mxu0
        %1714 = vdwg.mxu0
        %v1715 = vmul.f32 %v1673, %v1673
        %v1716 = vmul.f32 %v1686, %v1686
        %v1717 = vmul.f32 %v1699, %v1699
        %v1718 = vmul.f32 %v1712, %v1712
        %v1719 = vmul.f32 %v1673, %v1715
        %v1720 = vmul.f32 %v1686, %v1716
        %v1721 = vmul.f32 %v1699, %v1717
        %v1722 = vmul.f32 %v1712, %v1718
        %v1723 = vmul.f32 %v1719, 0.044715
        %v1724 = vmul.f32 %v1720, 0.044715
        %v1725 = vmul.f32 %v1721, 0.044715
        %v1726 = vmul.f32 %v1722, 0.044715
        %v1727 = vadd.f32 %v1673, %v1723
        %v1728 = vadd.f32 %v1686, %v1724
        %v1729 = vadd.f32 %v1699, %v1725
        %v1730 = vadd.f32 %v1712, %v1726
        %v1731 = vmul.f32 %v1727, 0.7978846
        %v1732 = vmul.f32 %v1728, 0.7978846
        %v1733 = vmul.f32 %v1729, 0.7978846
        %v1734 = vmul.f32 %v1730, 0.7978846
        %v1735 = vtanh.pop %v1731
        %v1736 = vtanh.pop %v1732
        %v1737 = vtanh.pop %v1733
        %v1738 = vtanh.pop %v1734
        %v1739 = vadd.f32 %v1735, 1.0
        %v1740 = vadd.f32 %v1736, 1.0
        %v1741 = vadd.f32 %v1737, 1.0
        %v1742 = vadd.f32 %v1738, 1.0
        %v1743 = vmul.f32 %v1739, 0.5
        %v1744 = vmul.f32 %v1740, 0.5
        %v1745 = vmul.f32 %v1741, 0.5
        %v1746 = vmul.f32 %v1742, 0.5
        %v1747 = vmul.f32 %v1673, %v1743
        %v1748 = vmul.f32 %v1686, %v1744
        %v1749 = vmul.f32 %v1699, %v1745
        %v1750 = vmul.f32 %v1712, %v1746
        %v1751 = vpack.c.bf16 %v1747, %v1747
        %v1752 = vpack.c.bf16 %v1748, %v1748
        %v1753 = vpack.c.bf16 %v1749, %v1749
        %v1754 = vpack.c.bf16 %v1750, %v1750
        %v1755 = vld [vmem:[%s839] sm:$0xf]
        %v1756 = vld [vmem:[%s839 + $0x4] sm:$0xf]
        %v1757 = vld [vmem:[%s839 + $0x8] sm:$0xf]
        %v1758 = vld [vmem:[%s839 + $0xc] sm:$0xf]
        %v1759 = vld [vmem:[%s839 + $0x10] sm:$0xf]
        %v1760 = vld [vmem:[%s839 + $0x14] sm:$0xf]
        %v1761 = vld [vmem:[%s839 + $0x18] sm:$0xf]
        %v1762 = vld [vmem:[%s839 + $0x1c] sm:$0xf]
        %v1763 = vld [vmem:[%s839 + $0x20] sm:$0xf]
        %v1764 = vld [vmem:[%s839 + $0x24] sm:$0xf]
        %v1765 = vld [vmem:[%s839 + $0x28] sm:$0xf]
        %v1766 = vld [vmem:[%s839 + $0x2c] sm:$0xf]
        %v1767 = vld [vmem:[%s839 + $0x30] sm:$0xf]
        %v1768 = vld [vmem:[%s839 + $0x34] sm:$0xf]
        %v1769 = vld [vmem:[%s839 + $0x38] sm:$0xf]
        %v1770 = vld [vmem:[%s839 + $0x3c] sm:$0xf]
        %v1771 = vld [vmem:[%s839 + $0x40] sm:$0xf]
        %v1772 = vld [vmem:[%s839 + $0x44] sm:$0xf]
        %v1773 = vld [vmem:[%s839 + $0x48] sm:$0xf]
        %v1774 = vld [vmem:[%s839 + $0x4c] sm:$0xf]
        %v1775 = vld [vmem:[%s839 + $0x50] sm:$0xf]
        %v1776 = vld [vmem:[%s839 + $0x54] sm:$0xf]
        %v1777 = vld [vmem:[%s839 + $0x58] sm:$0xf]
        %v1778 = vld [vmem:[%s839 + $0x5c] sm:$0xf]
        %v1779 = vld [vmem:[%s839 + $0x60] sm:$0xf]
        %v1780 = vld [vmem:[%s839 + $0x64] sm:$0xf]
        %v1781 = vld [vmem:[%s839 + $0x68] sm:$0xf]
        %v1782 = vld [vmem:[%s839 + $0x6c] sm:$0xf]
        %v1783 = vld [vmem:[%s839 + $0x70] sm:$0xf]
        %v1784 = vld [vmem:[%s839 + $0x74] sm:$0xf]
        %v1785 = vld [vmem:[%s839 + $0x78] sm:$0xf]
        %v1786 = vld [vmem:[%s839 + $0x7c] sm:$0xf]
        %v1787 = vld [vmem:[%s839 + $0x80] sm:$0xf]
        %v1788 = vld [vmem:[%s839 + $0x84] sm:$0xf]
        %v1789 = vld [vmem:[%s839 + $0x88] sm:$0xf]
        %v1790 = vld [vmem:[%s839 + $0x8c] sm:$0xf]
        %v1791 = vld [vmem:[%s839 + $0x90] sm:$0xf]
        %v1792 = vld [vmem:[%s839 + $0x94] sm:$0xf]
        %v1793 = vld [vmem:[%s839 + $0x98] sm:$0xf]
        %v1794 = vld [vmem:[%s839 + $0x9c] sm:$0xf]
        %v1795 = vld [vmem:[%s839 + $0xa0] sm:$0xf]
        %v1796 = vld [vmem:[%s839 + $0xa4] sm:$0xf]
        %v1797 = vld [vmem:[%s839 + $0xa8] sm:$0xf]
        %v1798 = vld [vmem:[%s839 + $0xac] sm:$0xf]
        %v1799 = vld [vmem:[%s839 + $0xb0] sm:$0xf]
        %v1800 = vld [vmem:[%s839 + $0xb4] sm:$0xf]
        %v1801 = vld [vmem:[%s839 + $0xb8] sm:$0xf]
        %v1802 = vld [vmem:[%s839 + $0xbc] sm:$0xf]
        %v1803 = vld [vmem:[%s839 + $0xc0] sm:$0xf]
        %v1804 = vld [vmem:[%s839 + $0xc4] sm:$0xf]
        %v1805 = vld [vmem:[%s839 + $0xc8] sm:$0xf]
        %v1806 = vld [vmem:[%s839 + $0xcc] sm:$0xf]
        %v1807 = vld [vmem:[%s839 + $0xd0] sm:$0xf]
        %v1808 = vld [vmem:[%s839 + $0xd4] sm:$0xf]
        %v1809 = vld [vmem:[%s839 + $0xd8] sm:$0xf]
        %v1810 = vld [vmem:[%s839 + $0xdc] sm:$0xf]
        %v1811 = vld [vmem:[%s839 + $0xe0] sm:$0xf]
        %v1812 = vld [vmem:[%s839 + $0xe4] sm:$0xf]
        %v1813 = vld [vmem:[%s839 + $0xe8] sm:$0xf]
        %v1814 = vld [vmem:[%s839 + $0xec] sm:$0xf]
        %v1815 = vld [vmem:[%s839 + $0xf0] sm:$0xf]
        %v1816 = vld [vmem:[%s839 + $0xf4] sm:$0xf]
        %v1817 = vld [vmem:[%s839 + $0xf8] sm:$0xf]
        %v1818 = vld [vmem:[%s839 + $0xfc] sm:$0xf]
        %v1819 = vld [vmem:[%s962] sm:$0x1]
        %v1821 = vperm.slane %v1819, 0
        %v1887 = vunpack.c.l.b16 %v1755
        %v1888 = vunpack.c.l.b16 %v1756
        %v1889 = vunpack.c.l.b16 %v1757
        %v1890 = vunpack.c.l.b16 %v1758
        %v1891 = vunpack.c.l.b16 %v1759
        %v1892 = vunpack.c.l.b16 %v1760
        %v1893 = vunpack.c.l.b16 %v1761
        %v1894 = vunpack.c.l.b16 %v1762
        %v1895 = vunpack.c.l.b16 %v1763
        %v1896 = vunpack.c.l.b16 %v1764
        %v1897 = vunpack.c.l.b16 %v1765
        %v1898 = vunpack.c.l.b16 %v1766
        %v1899 = vunpack.c.l.b16 %v1767
        %v1900 = vunpack.c.l.b16 %v1768
        %v1901 = vunpack.c.l.b16 %v1769
        %v1902 = vunpack.c.l.b16 %v1770
        %v1903 = vunpack.c.l.b16 %v1771
        %v1904 = vunpack.c.l.b16 %v1772
        %v1905 = vunpack.c.l.b16 %v1773
        %v1906 = vunpack.c.l.b16 %v1774
        %v1907 = vunpack.c.l.b16 %v1775
        %v1908 = vunpack.c.l.b16 %v1776
        %v1909 = vunpack.c.l.b16 %v1777
        %v1910 = vunpack.c.l.b16 %v1778
        %v1911 = vunpack.c.l.b16 %v1779
        %v1912 = vunpack.c.l.b16 %v1780
        %v1913 = vunpack.c.l.b16 %v1781
        %v1914 = vunpack.c.l.b16 %v1782
        %v1915 = vunpack.c.l.b16 %v1783
        %v1916 = vunpack.c.l.b16 %v1784
        %v1917 = vunpack.c.l.b16 %v1785
        %v1918 = vunpack.c.l.b16 %v1786
        %v1919 = vunpack.c.l.b16 %v1787
        %v1920 = vunpack.c.l.b16 %v1788
        %v1921 = vunpack.c.l.b16 %v1789
        %v1922 = vunpack.c.l.b16 %v1790
        %v1923 = vunpack.c.l.b16 %v1791
        %v1924 = vunpack.c.l.b16 %v1792
        %v1925 = vunpack.c.l.b16 %v1793
        %v1926 = vunpack.c.l.b16 %v1794
        %v1927 = vunpack.c.l.b16 %v1795
        %v1928 = vunpack.c.l.b16 %v1796
        %v1929 = vunpack.c.l.b16 %v1797
        %v1930 = vunpack.c.l.b16 %v1798
        %v1931 = vunpack.c.l.b16 %v1799
        %v1932 = vunpack.c.l.b16 %v1800
        %v1933 = vunpack.c.l.b16 %v1801
        %v1934 = vunpack.c.l.b16 %v1802
        %v1935 = vunpack.c.l.b16 %v1803
        %v1936 = vunpack.c.l.b16 %v1804
        %v1937 = vunpack.c.l.b16 %v1805
        %v1938 = vunpack.c.l.b16 %v1806
        %v1939 = vunpack.c.l.b16 %v1807
        %v1940 = vunpack.c.l.b16 %v1808
        %v1941 = vunpack.c.l.b16 %v1809
        %v1942 = vunpack.c.l.b16 %v1810
        %v1943 = vunpack.c.l.b16 %v1811
        %v1944 = vunpack.c.l.b16 %v1812
        %v1945 = vunpack.c.l.b16 %v1813
        %v1946 = vunpack.c.l.b16 %v1814
        %v1947 = vunpack.c.l.b16 %v1815
        %v1948 = vunpack.c.l.b16 %v1816
        %v1949 = vunpack.c.l.b16 %v1817
        %v1950 = vunpack.c.l.b16 %v1818
        %v1951 = vpack.c.b16 %v1888, %v1887
        %v1952 = vpack.c.b16 %v1890, %v1889
        %v1953 = vpack.c.b16 %v1892, %v1891
        %v1954 = vpack.c.b16 %v1894, %v1893
        %v1955 = vpack.c.b16 %v1896, %v1895
        %v1956 = vpack.c.b16 %v1898, %v1897
        %v1957 = vpack.c.b16 %v1900, %v1899
        %v1958 = vpack.c.b16 %v1902, %v1901
        %v1959 = vpack.c.b16 %v1904, %v1903
        %v1960 = vpack.c.b16 %v1906, %v1905
        %v1961 = vpack.c.b16 %v1908, %v1907
        %v1962 = vpack.c.b16 %v1910, %v1909
        %v1963 = vpack.c.b16 %v1912, %v1911
        %v1964 = vpack.c.b16 %v1914, %v1913
        %v1965 = vpack.c.b16 %v1916, %v1915
        %v1966 = vpack.c.b16 %v1918, %v1917
        %v1967 = vpack.c.b16 %v1920, %v1919
        %v1968 = vpack.c.b16 %v1922, %v1921
        %v1969 = vpack.c.b16 %v1924, %v1923
        %v1970 = vpack.c.b16 %v1926, %v1925
        %v1971 = vpack.c.b16 %v1928, %v1927
        %v1972 = vpack.c.b16 %v1930, %v1929
        %v1973 = vpack.c.b16 %v1932, %v1931
        %v1974 = vpack.c.b16 %v1934, %v1933
        %v1975 = vpack.c.b16 %v1936, %v1935
        %v1976 = vpack.c.b16 %v1938, %v1937
        %v1977 = vpack.c.b16 %v1940, %v1939
        %v1978 = vpack.c.b16 %v1942, %v1941
        %v1979 = vpack.c.b16 %v1944, %v1943
        %v1980 = vpack.c.b16 %v1946, %v1945
        %v1981 = vpack.c.b16 %v1948, %v1947
        %v1982 = vpack.c.b16 %v1950, %v1949
        %2015 = vmatpush.bf16.msra.mxu0 %v1958
        %2016 = vmatpush.bf16.msra.mxu0 %v1957
        %2017 = vmatpush.bf16.msra.mxu0 %v1956
        %2018 = vmatpush.bf16.msra.mxu0 %v1955
        %2019 = vmatpush.bf16.msra.mxu0 %v1954
        %2020 = vmatpush.bf16.msra.mxu0 %v1953
        %2021 = vmatpush.bf16.msra.mxu0 %v1952
        %2022 = vmatpush.bf16.msra.mxu0 %v1951
        %2023 = vmatmul.bf16.gmra.mxu0 %v1751
        %v2024 = vpop.f32.mrf.mxu0
        %v2025 = vadd.f32 %v1821, %v2024
        %v2026 = vpop.f32.mrf.mxu0
        %2027 = vdwg.mxu0
        %2028 = vmatpush.bf16.msra.mxu0 %v1966
        %2029 = vmatpush.bf16.msra.mxu0 %v1965
        %2030 = vmatpush.bf16.msra.mxu0 %v1964
        %2031 = vmatpush.bf16.msra.mxu0 %v1963
        %2032 = vmatpush.bf16.msra.mxu0 %v1962
        %2033 = vmatpush.bf16.msra.mxu0 %v1961
        %2034 = vmatpush.bf16.msra.mxu0 %v1960
        %2035 = vmatpush.bf16.msra.mxu0 %v1959
        %2036 = vmatmul.bf16.gmra.mxu0 %v1752
        %v2037 = vpop.f32.mrf.mxu0
        %v2038 = vadd.f32 %v2025, %v2037
        %v2039 = vpop.f32.mrf.mxu0
        %2040 = vdwg.mxu0
        %2041 = vmatpush.bf16.msra.mxu0 %v1974
        %2042 = vmatpush.bf16.msra.mxu0 %v1973
        %2043 = vmatpush.bf16.msra.mxu0 %v1972
        %2044 = vmatpush.bf16.msra.mxu0 %v1971
        %2045 = vmatpush.bf16.msra.mxu0 %v1970
        %2046 = vmatpush.bf16.msra.mxu0 %v1969
        %2047 = vmatpush.bf16.msra.mxu0 %v1968
        %2048 = vmatpush.bf16.msra.mxu0 %v1967
        %2049 = vmatmul.bf16.gmra.mxu0 %v1753
        %v2050 = vpop.f32.mrf.mxu0
        %v2051 = vadd.f32 %v2038, %v2050
        %v2052 = vpop.f32.mrf.mxu0
        %2053 = vdwg.mxu0
        %2054 = vmatpush.bf16.msra.mxu0 %v1982
        %2055 = vmatpush.bf16.msra.mxu0 %v1981
        %2056 = vmatpush.bf16.msra.mxu0 %v1980
        %2057 = vmatpush.bf16.msra.mxu0 %v1979
        %2058 = vmatpush.bf16.msra.mxu0 %v1978
        %2059 = vmatpush.bf16.msra.mxu0 %v1977
        %2060 = vmatpush.bf16.msra.mxu0 %v1976
        %2061 = vmatpush.bf16.msra.mxu0 %v1975
        %2062 = vmatmul.bf16.gmra.mxu0 %v1754
        %v2063 = vpop.f32.mrf.mxu0
        %v2064 = vadd.f32 %v2051, %v2063
        %v2065 = vpop.f32.mrf.mxu0
        %2066 = vdwg.mxu0
        %v2067 = vadd.f32 %v1459, %v2064
        %v2068 = vld [vmem:[%s848] sm:$0x1]
        %v2069 = vld [vmem:[%s965] sm:$0x1]
        %2070 = vadd.xlane.f32.xlu0 %v2067
        %v2071 = vpop.xlane.xlu0 %2070
        %v2072 = vmul.f32 %v2071, %v1433
        %v2073 = vsub.f32 %v2067, %v2072
        %v2074 = vmul.f32 %v2073, %v2073
        %2075 = vadd.xlane.f32.xlu0 %v2074
        %v2076 = vpop.xlane.xlu0 %2075
        %v2077 = vmul.f32 %v2076, %v1433
        %v2078 = vadd.f32 %v2077, 1e-12
        %v2079 = vrsqrt.pop %v2078
        %v2080 = vmul.f32 %v2079, %v2078
        %v2081 = vmul.f32 %v2080, %v2079
        %v2082 = vmul.f32 0.5, %v2081
        %v2083 = vsub.f32 1.5, %v2082
        %v2084 = vmul.f32 %v2079, %v2083
        %vm2085 = vweird.f32 %v2078
        %vm2086 = vweird.f32 %v2079
        %vm2087 = vmor %vm2085, %vm2086
        %v2088 = vsel %vm2087, %v2079, %v2084
        %v2089 = vmul.f32 %v2073, %v2088
        %v2091 = vperm.slane %v2068, 0
        %v2093 = vmul.f32 %v2089, %v2091
        %v2095 = vperm.slane %v2069, 0
        %v2097 = vadd.f32 %v2093, %v2095
        %2098 = vst [vmem:[#allocation2] sm:$0xff] %v2097
        %p2099 = scmp.eq.s32.totalorder %s42, 1
        // Predicated region
        $region137: #{tpu_custom_call.1} parent=83 // pred_check
          %p2100 = pneg %p2099
        $region138: #{tpu_custom_call.1} parent=83 // pred_check_branch
          %2102 = sbr.rel (%p2100) target = $region140
        $region139: #{tpu_custom_call.1} parent=83 // pred_region
          %v2103 = vpack.c.bf16 %v2097, %v2097
          %2104 = vst [vmem:[%s952] sm:$0xf] %v2103
        $region140: #{tpu_custom_call.1} parent=83 // pred_fallthru
          _
        %s2105 = sand.u32 %s463, 1
        %s2106 = scalar_lea.sflag [#allocation5], %s2105
        %s2107 = sand.u32 %s463, 1
        %s2108 = smul.addr %s2107, 4
        %s2109 = scalar_lea.vmem [#allocation19], %s2108
        // Predicated region
        $region141: #{tpu_custom_call.1} parent=83 // pred_check
          %p2110 = pneg %p473
        $region142: #{tpu_custom_call.1} parent=83 // pred_check_branch
          %2112 = sbr.rel (%p2110) target = $region144
        $region143: #{tpu_custom_call.1} parent=83 // pred_region
          %2114 = vsyncadd %s2106, 0
          %s2115 = smul.addr %s41, 4
          %s2116 = scalar_lea.hbm %s16, %s2115
          %s2118 = sshll.u32 %s2109, 4
          %s2119 = int_to_ptr.vmem [resolvable:$true] %s2118
          %s2120 = sshll.u32 %s2116, 4
          %s2121 = int_to_ptr.hbm [resolvable:$true] %s2120
          %2123 = dma.vmem_to_hbm [thread:$0]  %s2119, 64, %s2121, %s2106
        $region144: #{tpu_custom_call.1} parent=83 // pred_fallthru
          _
      $region84: #{tpu_custom_call.1} parent=5 // pred_fallthru
        _
      %p2124 = scmp.le.s32.totalorder 2, %s32
      // Predicated region
      $region145: #{tpu_custom_call.1} parent=5 // pred_check
        %p2125 = pneg %p2124
      $region146: #{tpu_custom_call.1} parent=5 // pred_check_branch
        %2127 = sbr.rel (%p2125) target = $region148
      $region147: #{tpu_custom_call.1} parent=5 // pred_region
        %s2128 = ssub.s32 %s32, 2
        // Predicated region
        $region149: #{tpu_custom_call.1} parent=147 // pred_check
          %p2129 = pneg %p479
        $region150: #{tpu_custom_call.1} parent=147 // pred_check_branch
          %2131 = sbr.rel (%p2129) target = $region152
        $region151: #{tpu_custom_call.1} parent=147 // pred_region
          %s2132 = sand.u32 %s464, 1
          %s2133 = scalar_lea.sflag [#allocation5], %s2132
          %s2134 = sand.u32 %s464, 1
          %s2135 = smul.addr %s2134, 4
          %s2136 = scalar_lea.vmem [#allocation19], %s2135
          %2138 = dma.done %s2133, 64
        $region152: #{tpu_custom_call.1} parent=147 // pred_fallthru
          _
      $region148: #{tpu_custom_call.1} parent=5 // pred_fallthru
        _
    $region6: #{tpu_custom_call.1} parent=1 // loop_footer
      %s36 = sadd.s32 1, %s32
    $region7: #{tpu_custom_call.1} parent=1 // loop_footer_branch
      %31 = sbr.rel target = $region3
    $region8: #{tpu_custom_call.1} parent=1 // loop_exit
      _
    %2139 = vsyncpa [#allocation4], 1
    %s2140 = scalar_lea.sflag [#allocation4], 1
    %2141 = vsyncpa %s2140, 1
    %2142 = vsyncpa [#allocation7], 1
    %s2143 = scalar_lea.sflag [#allocation7], 1
    %2144 = vsyncpa %s2143, 1
    %2145 = vsyncpa [#allocation10], 1
    %2146 = vsyncpa [#allocation5], 1
    %s2147 = scalar_lea.sflag [#allocation5], 1
    %2148 = vsyncpa %s2147, 1

</llo_original>
